<compile_context>
chip_gen: v5e
topology: v5e:2x2
jax: 0.10.0
libtpu: 0.0.40
codegen_flags: <defaults>
</compile_context>

<pallas_src>
import functools

import jax
import jax.numpy as jnp
from jax import lax
from jax.experimental import pallas as pl
from jax.experimental.pallas import tpu as pltpu


def _round_up(x, m):
    return ((x + m - 1) // m) * m


def _layernorm(v, gamma, beta, eps=1e-5):
    # PyTorch nn.LayerNorm semantics: biased variance, eps=1e-5.
    mu = jnp.mean(v, axis=-1, keepdims=True)
    var = jnp.mean((v - mu) ** 2, axis=-1, keepdims=True)
    return (v - mu) * lax.rsqrt(var + eps) * gamma + beta


def _slot_pad_cols(a, hd, hdp):
    """(N, k*hd) -> (N, k*hdp): each hd-wide column block in its own hdp slot."""
    if hdp == hd:
        return a
    n, total = a.shape
    k = total // hd
    a = a.reshape(n, k, hd)
    a = jnp.pad(a, ((0, 0), (0, 0), (0, hdp - hd)))
    return a.reshape(n, k * hdp)


# ----------------------------- recurrent kernel ------------------------------

def gru_recurrent_kernel(xi_ref, xw_ref, whu_ref, ln1_ref, ln4_ref,
                         hseq_ref, h_scr, *, hdp, chunk, inv_n1, inv_n4,
                         padded, unroll):
    """One grid step = `chunk` GRU cell updates over one batch tile.

    xi_ref : (TC, TB, 2*Hdp)  pre-projected + ln2'd x@W_i, ln1 beta folded in
    xw_ref : (TC, TB, Hdp)    pre-projected + ln3'd x@W
    whu_ref: (Hdp, 3*Hdp)     concat(W_h, U), zero-padded, slot layout
    ln1_ref: (2, 2*Hdp)       row0 = gamma (beta folded), row1 = valid-lane mask
    ln4_ref: (3, Hdp)         rows = gamma, beta, valid-lane mask
    hseq_ref: (TC, TB, Hdp)   output chunk (time-major)
    h_scr  : (TB, Hdp)        carried hidden state (resident across grid steps)
    """
    gp = 2 * hdp
    tb = h_scr.shape[0]

    @pl.when(pl.program_id(1) == 0)
    def _():
        h_scr[...] = jnp.zeros_like(h_scr)

    whu = whu_ref[...]

    # Hoisted broadcasts (re-emitted per use otherwise; JAX doesn't CSE them).
    ln1_g = jnp.broadcast_to(ln1_ref[0:1, :], (tb, gp))
    ln4_g = jnp.broadcast_to(ln4_ref[0:1, :], (tb, hdp))
    ln4_b = jnp.broadcast_to(ln4_ref[1:2, :], (tb, hdp))
    if padded:
        ln1_m = jnp.broadcast_to(ln1_ref[1:2, :], (tb, gp))
        ln4_m = jnp.broadcast_to(ln4_ref[2:3, :], (tb, hdp))
    else:
        ln1_m = None
        ln4_m = None

    def masked_ln(v, mask, inv_n):
        # v is exactly zero on pad lanes, so the sum needs no mask; the variance
        # does (v - mu is nonzero on pads).  inv_n = 1/num_valid_lanes.
        mu = jnp.sum(v, axis=-1, keepdims=True) * inv_n
        d = v - mu
        dm = d * mask if mask is not None else d
        var = jnp.sum(dm * dm, axis=-1, keepdims=True) * inv_n
        return d * lax.rsqrt(var + 1e-5)

    def step(i, h):
        # Single fused h-side matmul: (TB, Hdp) @ (Hdp, 3*Hdp) -> (TB, 3*Hdp)
        hp = jnp.dot(h, whu, preferred_element_type=jnp.float32)
        # gates: ln1 gamma applied here, ln1 beta already folded into xi.
        gates = masked_ln(hp[:, :gp], ln1_m, inv_n1) * ln1_g + xi_ref[i]
        sig = jax.nn.sigmoid(gates)          # one wide EUP push for z and r
        zs = sig[:, :hdp]                    # 128-aligned slices
        sr = sig[:, hdp:]
        cand = masked_ln(hp[:, gp:], ln4_m, inv_n4) * ln4_g + ln4_b
        hh = jnp.tanh(xw_ref[i] + sr * cand)
        h_new = (1.0 - zs) * h + zs * hh
        hseq_ref[i] = h_new                  # dense (TB, Hdp) tile store
        return h_new

    h_scr[...] = lax.fori_loop(0, chunk, step, h_scr[...], unroll=unroll)


# ----------------------------- wrapper ---------------------------------------

@jax.jit
def gru_forward_pallas(x, params):
    """x: (B, T, D) float32. Returns (H_seq (B,T,Hd), h_final (B,Hd))."""
    B, T, D = x.shape
    Hd = params["W"].shape[1]
    Hdp = _round_up(Hd, 128)
    GP = 2 * Hdp

    # ---- hoisted x-side projections: one big batched matmul + LayerNorms ----
    W_x = jnp.concatenate([params["W_i"], params["W"]], axis=1)        # (D, 3*Hd)
    xp = jnp.dot(x.reshape(B * T, D), W_x,
                 preferred_element_type=jnp.float32)                   # (B*T, 3*Hd)
    xi = _layernorm(xp[:, :2 * Hd], params["ln2_g"], params["ln2_b"]) \
        + params["ln1_b"]                                              # ln1 beta folded
    xw = _layernorm(xp[:, 2 * Hd:], params["ln3_g"], params["ln3_b"])

    # lane-slotted padding + time-major layout for dense per-step tiles
    xi = _slot_pad_cols(xi, Hd, Hdp).reshape(B, T, GP).transpose(1, 0, 2)   # (T,B,2*Hdp)
    xw = _slot_pad_cols(xw, Hd, Hdp).reshape(B, T, Hdp).transpose(1, 0, 2)  # (T,B,Hdp)

    # ---- fused, lane-slotted h-side weights and packed LN params ------------
    W_hU = jnp.concatenate([params["W_h"], params["U"]], axis=1)       # (Hd, 3*Hd)
    W_hU = _slot_pad_cols(W_hU, Hd, Hdp)                               # (Hd, 3*Hdp)
    W_hU = jnp.pad(W_hU, ((0, Hdp - Hd), (0, 0)))                      # (Hdp, 3*Hdp)

    ones2h = jnp.ones((1, 2 * Hd), jnp.float32)
    ones1h = jnp.ones((1, Hd), jnp.float32)
    ln1_pack = jnp.concatenate([
        _slot_pad_cols(params["ln1_g"][None, :], Hd, Hdp),
        _slot_pad_cols(ones2h, Hd, Hdp)], axis=0)                      # (2, 2*Hdp)
    ln4_pack = jnp.concatenate([
        _slot_pad_cols(params["ln4_g"][None, :], Hd, Hdp),
        _slot_pad_cols(params["ln4_b"][None, :], Hd, Hdp),
        _slot_pad_cols(ones1h, Hd, Hdp)], axis=0)                      # (3, Hdp)

    # ---- batch tiling: 2 tiles (megacore-parallel on v7x) when divisible -----
    nb = 2 if (B % 16 == 0) else 1
    TB = B // nb

    # ---- time chunk from a v7x-safe VMEM budget (double-buffered streams) ----
    stream_bytes_per_t = 2 * 16 * TB * Hdp        # xi + xw + out, f32, 2 buffers
    vmem_stream_budget = 32 * 1024 * 1024
    tc_cap = max(1, min(128, vmem_stream_budget // stream_bytes_per_t))
    TC = 1
    for cand in range(1, T + 1):
        if T % cand == 0 and cand <= tc_cap:
            TC = cand
    n_chunks = T // TC
    unroll = TC if TC <= 8 else 8

    kernel = functools.partial(
        gru_recurrent_kernel, hdp=Hdp, chunk=TC,
        inv_n1=1.0 / (2 * Hd), inv_n4=1.0 / Hd,
        padded=(Hdp != Hd), unroll=unroll)

    grid_spec = pltpu.PrefetchScalarGridSpec(
        num_scalar_prefetch=0,
        grid=(nb, n_chunks),
        in_specs=[
            pl.BlockSpec((TC, TB, GP), lambda b, c: (c, b, 0)),      # xi chunk
            pl.BlockSpec((TC, TB, Hdp), lambda b, c: (c, b, 0)),     # xw chunk
            pl.BlockSpec((Hdp, 3 * Hdp), lambda b, c: (0, 0)),       # concat(W_h,U)
            pl.BlockSpec((2, GP), lambda b, c: (0, 0)),              # ln1 gamma/mask
            pl.BlockSpec((3, Hdp), lambda b, c: (0, 0)),             # ln4 g/b/mask
        ],
        out_specs=pl.BlockSpec((TC, TB, Hdp), lambda b, c: (c, b, 0)),
        scratch_shapes=[pltpu.VMEM((TB, Hdp), jnp.float32)],         # hidden carry
    )

    hseq_p = pl.pallas_call(
        kernel,
        out_shape=jax.ShapeDtypeStruct((T, B, Hdp), jnp.float32),
        grid_spec=grid_spec,
        compiler_params=pltpu.CompilerParams(
            dimension_semantics=("parallel", "arbitrary"),   # batch ∥, time seq
            vmem_limit_bytes=48 * 1024 * 1024,               # v7x-safe budget
        ),
    )(xi, xw, W_hU, ln1_pack, ln4_pack)

    hseq = hseq_p.transpose(1, 0, 2)[:, :, :Hd]              # (B, T, Hd)
    return hseq, hseq[:, -1, :]


# ----------------------------- reference (plain JAX) -------------------------

def gru_forward_ref(x, params):
    B, T, D = x.shape
    Hd = params["W"].shape[1]

    def ln(v, g, b, eps=1e-5):
        mu = jnp.mean(v, axis=-1, keepdims=True)
        var = jnp.mean((v - mu) ** 2, axis=-1, keepdims=True)
        return (v - mu) / jnp.sqrt(var + eps) * g + b

    def cell(h, x_t):
        gates = (ln(h @ params["W_h"], params["ln1_g"], params["ln1_b"])
                 + ln(x_t @ params["W_i"], params["ln2_g"], params["ln2_b"]))
        z, r = gates[:, :Hd], gates[:, Hd:]
        hh = jnp.tanh(ln(x_t @ params["W"], params["ln3_g"], params["ln3_b"])
                      + jax.nn.sigmoid(r)
                      * ln(h @ params["U"], params["ln4_g"], params["ln4_b"]))
        zs = jax.nn.sigmoid(z)
        h_new = (1.0 - zs) * h + zs * hh
        return h_new, h_new

    h0 = jnp.zeros((B, Hd), jnp.float32)
    h_final, hs = jax.lax.scan(cell, h0, jnp.transpose(x, (1, 0, 2)))
    return jnp.transpose(hs, (1, 0, 2)), h_final


# ----------------------------- param init ------------------------------------

def init_params(key, input_dim, hidden_dim):
    ks = jax.random.split(key, 6)

    def xavier(k, shape):
        bound = jnp.sqrt(6.0 / (shape[0] + shape[1]))
        return jax.random.uniform(k, shape, jnp.float32, -bound, bound)

    def orthogonal(k, n):
        a = jax.random.normal(k, (n, n), jnp.float32)
        q, _ = jnp.linalg.qr(a)
        return q

    W_iz = xavier(ks[0], (input_dim, hidden_dim))
    W_ir = xavier(ks[1], (input_dim, hidden_dim))
    W = xavier(ks[2], (input_dim, hidden_dim))
    W_hz = orthogonal(ks[3], hidden_dim)
    W_hr = orthogonal(ks[4], hidden_dim)
    U = orthogonal(ks[5], hidden_dim)

    return {
        "W_i": jnp.concatenate([W_iz, W_ir], axis=1),   # (D, 2H)
        "W_h": jnp.concatenate([W_hz, W_hr], axis=1),   # (H, 2H)
        "W": W,                                         # (D, H)
        "U": U,                                         # (H, H)
        # nn.LayerNorm default affine init: weight=1, bias=0
        "ln1_g": jnp.ones((2 * hidden_dim,), jnp.float32),
        "ln1_b": jnp.zeros((2 * hidden_dim,), jnp.float32),
        "ln2_g": jnp.ones((2 * hidden_dim,), jnp.float32),
        "ln2_b": jnp.zeros((2 * hidden_dim,), jnp.float32),
        "ln3_g": jnp.ones((hidden_dim,), jnp.float32),
        "ln3_b": jnp.zeros((hidden_dim,), jnp.float32),
        "ln4_g": jnp.ones((hidden_dim,), jnp.float32),
        "ln4_b": jnp.zeros((hidden_dim,), jnp.float32),
    }


# ----------------------------- main -------------------------------------------

if __name__ == "__main__":
    B, T, D, Hd = 8, 8, 16, 32

    key = jax.random.PRNGKey(0)
    kx, kp = jax.random.split(key)
    x = jax.random.normal(kx, (B, T, D), jnp.float32)
    params = init_params(kp, D, Hd)

    hseq, hfin = gru_forward_pallas(x, params)
    jax.block_until_ready((hseq, hfin))

    hseq_ref, hfin_ref = gru_forward_ref(x, params)
    assert hseq.shape == (B, T, Hd) and hfin.shape == (B, Hd)
    assert jnp.allclose(hseq, hseq_ref, rtol=1e-4, atol=1e-5)
    assert jnp.allclose(hfin, hfin_ref, rtol=1e-4, atol=1e-5)

    print("KERNEL_OK")
</pallas_src>

<mosaic_0001>
module attributes {stable_mosaic.version = 11 : i64} {
  func.func @gru_recurrent_kernel(%arg0: i32, %arg1: i32, %arg2: memref<8x8x256xf32, #tpu.memory_space<vmem>>, %arg3: memref<8x8x128xf32, #tpu.memory_space<vmem>>, %arg4: memref<128x384xf32, #tpu.memory_space<vmem>>, %arg5: memref<2x256xf32, #tpu.memory_space<vmem>>, %arg6: memref<3x128xf32, #tpu.memory_space<vmem>>, %arg7: memref<8x8x128xf32, #tpu.memory_space<vmem>>, %arg8: memref<8x128xf32, #tpu.memory_space<vmem>>) attributes {dimension_semantics = [#tpu.dimension_semantics<parallel>, #tpu.dimension_semantics<arbitrary>], iteration_bounds = array<i64: 1, 1>, scalar_prefetch = 0 : i64, scratch_operands = 1 : i64, tpu.core_type = #tpu.core_type<tc>, window_params = [{transform_indices = @transform_0, window_bounds = array<i64: 8, 8, 256>}, {transform_indices = @transform_1, window_bounds = array<i64: 8, 8, 128>}, {pipeline_mode = #tpu.pipeline_mode<synchronous>, transform_indices = @transform_2, window_bounds = array<i64: 128, 384>}, {pipeline_mode = #tpu.pipeline_mode<synchronous>, transform_indices = @transform_3, window_bounds = array<i64: 2, 256>}, {pipeline_mode = #tpu.pipeline_mode<synchronous>, transform_indices = @transform_4, window_bounds = array<i64: 3, 128>}, {transform_indices = @transform_5, window_bounds = array<i64: 8, 8, 128>}]} {
    %c0_i32 = arith.constant 0 : i32
    %0 = arith.cmpi eq, %arg1, %c0_i32 : i32
    %1 = arith.extui %0 : i1 to i32
    %c0_i32_0 = arith.constant 0 : i32
    %2 = arith.cmpi ne, %1, %c0_i32_0 : i32
    scf.if %2 {
      %cst_166 = arith.constant 0.000000e+00 : f32
      %549 = vector.broadcast %cst_166 : f32 to vector<8x128xf32>
      %c0_167 = arith.constant 0 : index
      %c0_168 = arith.constant 0 : index
      %550 = vector.load %arg8[%c0_167, %c0_168] : memref<8x128xf32, #tpu.memory_space<vmem>>, vector<8x128xf32>
      tpu.vector_store %arg8[%c0_167, %c0_168], %549 {strides = array<i32>} : memref<8x128xf32, #tpu.memory_space<vmem>>, vector<8x128xf32>,
    } else {
    }
    %c0 = arith.constant 0 : index
    %c0_1 = arith.constant 0 : index
    %3 = vector.load %arg4[%c0, %c0_1] : memref<128x384xf32, #tpu.memory_space<vmem>>, vector<128x384xf32>
    %c0_2 = arith.constant 0 : index
    %c0_3 = arith.constant 0 : index
    %4 = vector.load %arg5[%c0_2, %c0_3] : memref<2x256xf32, #tpu.memory_space<vmem>>, vector<1x256xf32>
    %5 = vector.shape_cast %4 : vector<1x256xf32> to vector<1x256xf32>
    %6 = vector.broadcast %5 : vector<1x256xf32> to vector<8x256xf32>
    %c0_4 = arith.constant 0 : index
    %c0_5 = arith.constant 0 : index
    %7 = vector.load %arg6[%c0_4, %c0_5] : memref<3x128xf32, #tpu.memory_space<vmem>>, vector<1x128xf32>
    %8 = vector.shape_cast %7 : vector<1x128xf32> to vector<1x128xf32>
    %9 = vector.broadcast %8 : vector<1x128xf32> to vector<8x128xf32>
    %c1 = arith.constant 1 : index
    %c0_6 = arith.constant 0 : index
    %10 = vector.load %arg6[%c1, %c0_6] : memref<3x128xf32, #tpu.memory_space<vmem>>, vector<1x128xf32>
    %11 = vector.shape_cast %10 : vector<1x128xf32> to vector<1x128xf32>
    %12 = vector.broadcast %11 : vector<1x128xf32> to vector<8x128xf32>
    %c1_7 = arith.constant 1 : index
    %c0_8 = arith.constant 0 : index
    %13 = vector.load %arg5[%c1_7, %c0_8] : memref<2x256xf32, #tpu.memory_space<vmem>>, vector<1x256xf32>
    %14 = vector.shape_cast %13 : vector<1x256xf32> to vector<1x256xf32>
    %15 = vector.broadcast %14 : vector<1x256xf32> to vector<8x256xf32>
    %c2 = arith.constant 2 : index
    %c0_9 = arith.constant 0 : index
    %16 = vector.load %arg6[%c2, %c0_9] : memref<3x128xf32, #tpu.memory_space<vmem>>, vector<1x128xf32>
    %17 = vector.shape_cast %16 : vector<1x128xf32> to vector<1x128xf32>
    %18 = vector.broadcast %17 : vector<1x128xf32> to vector<8x128xf32>
    %c0_10 = arith.constant 0 : index
    %c0_11 = arith.constant 0 : index
    %19 = vector.load %arg8[%c0_10, %c0_11] : memref<8x128xf32, #tpu.memory_space<vmem>>, vector<8x128xf32>
    %c0_i32_12 = arith.constant 0 : i32
    %cst = arith.constant dense<0.000000e+00> : vector<8x384xf32>
    %20 = tpu.matmul %19, %3, %cst {dimension_numbers = #tpu.dot_dimension_numbers<[1], [0], [0], [1], [0, 0, 1, 1], [], []>} : vector<8x128xf32>, vector<128x384xf32>, vector<8x384xf32> -> vector<8x384xf32>
    %21 = vector.extract_strided_slice %20 {offsets = [0, 0], sizes = [8, 256], strides = [1, 1]} : vector<8x384xf32> to vector<8x256xf32>
    %cst_13 = arith.constant dense<0.000000e+00> : vector<8xf32>
    %22 = vector.multi_reduction <add>, %21, %cst_13 [1] : vector<8x256xf32> to vector<8xf32>
    %23 = vector.shape_cast %22 : vector<8xf32> to vector<8x1xf32>
    %cst_14 = arith.constant 1.562500e-02 : f32
    %24 = vector.broadcast %cst_14 : f32 to vector<8x1xf32>
    %25 = arith.mulf %23, %24 : vector<8x1xf32>
    %26 = vector.broadcast %25 : vector<8x1xf32> to vector<8x256xf32>
    %27 = arith.subf %21, %26 : vector<8x256xf32>
    %28 = arith.mulf %27, %15 : vector<8x256xf32>
    %29 = arith.mulf %28, %28 : vector<8x256xf32>
    %cst_15 = arith.constant dense<0.000000e+00> : vector<8xf32>
    %30 = vector.multi_reduction <add>, %29, %cst_15 [1] : vector<8x256xf32> to vector<8xf32>
    %31 = vector.shape_cast %30 : vector<8xf32> to vector<8x1xf32>
    %cst_16 = arith.constant 1.562500e-02 : f32
    %32 = vector.broadcast %cst_16 : f32 to vector<8x1xf32>
    %33 = arith.mulf %31, %32 : vector<8x1xf32>
    %cst_17 = arith.constant 9.99999974E-6 : f32
    %34 = vector.broadcast %cst_17 : f32 to vector<8x1xf32>
    %35 = arith.addf %33, %34 : vector<8x1xf32>
    %36 = math.rsqrt %35 : vector<8x1xf32>
    %37 = vector.broadcast %36 : vector<8x1xf32> to vector<8x256xf32>
    %38 = arith.mulf %27, %37 : vector<8x256xf32>
    %39 = arith.mulf %38, %6 : vector<8x256xf32>
    %40 = arith.index_cast %c0_i32_12 : i32 to index
    %c0_18 = arith.constant 0 : index
    %c0_19 = arith.constant 0 : index
    %41 = vector.load %arg2[%40, %c0_18, %c0_19] : memref<8x8x256xf32, #tpu.memory_space<vmem>>, vector<1x8x256xf32>
    %42 = vector.shape_cast %41 : vector<1x8x256xf32> to vector<8x256xf32>
    %43 = arith.addf %39, %42 : vector<8x256xf32>
    %44 = arith.negf %43 : vector<8x256xf32>
    %45 = math.exp %44 : vector<8x256xf32>
    %cst_20 = arith.constant 1.000000e+00 : f32
    %46 = vector.broadcast %cst_20 : f32 to vector<8x256xf32>
    %47 = arith.addf %46, %45 : vector<8x256xf32>
    %48 = arith.divf %46, %47 : vector<8x256xf32>
    %49 = vector.extract_strided_slice %48 {offsets = [0, 0], sizes = [8, 128], strides = [1, 1]} : vector<8x256xf32> to vector<8x128xf32>
    %50 = vector.extract_strided_slice %48 {offsets = [0, 128], sizes = [8, 128], strides = [1, 1]} : vector<8x256xf32> to vector<8x128xf32>
    %51 = vector.extract_strided_slice %20 {offsets = [0, 256], sizes = [8, 128], strides = [1, 1]} : vector<8x384xf32> to vector<8x128xf32>
    %cst_21 = arith.constant dense<0.000000e+00> : vector<8xf32>
    %52 = vector.multi_reduction <add>, %51, %cst_21 [1] : vector<8x128xf32> to vector<8xf32>
    %53 = vector.shape_cast %52 : vector<8xf32> to vector<8x1xf32>
    %cst_22 = arith.constant 3.125000e-02 : f32
    %54 = vector.broadcast %cst_22 : f32 to vector<8x1xf32>
    %55 = arith.mulf %53, %54 : vector<8x1xf32>
    %56 = vector.broadcast %55 : vector<8x1xf32> to vector<8x128xf32>
    %57 = arith.subf %51, %56 : vector<8x128xf32>
    %58 = arith.mulf %57, %18 : vector<8x128xf32>
    %59 = arith.mulf %58, %58 : vector<8x128xf32>
    %cst_23 = arith.constant dense<0.000000e+00> : vector<8xf32>
    %60 = vector.multi_reduction <add>, %59, %cst_23 [1] : vector<8x128xf32> to vector<8xf32>
    %61 = vector.shape_cast %60 : vector<8xf32> to vector<8x1xf32>
    %cst_24 = arith.constant 3.125000e-02 : f32
    %62 = vector.broadcast %cst_24 : f32 to vector<8x1xf32>
    %63 = arith.mulf %61, %62 : vector<8x1xf32>
    %cst_25 = arith.constant 9.99999974E-6 : f32
    %64 = vector.broadcast %cst_25 : f32 to vector<8x1xf32>
    %65 = arith.addf %63, %64 : vector<8x1xf32>
    %66 = math.rsqrt %65 : vector<8x1xf32>
    %67 = vector.broadcast %66 : vector<8x1xf32> to vector<8x128xf32>
    %68 = arith.mulf %57, %67 : vector<8x128xf32>
    %69 = arith.mulf %68, %9 : vector<8x128xf32>
    %70 = arith.addf %69, %12 : vector<8x128xf32>
    %71 = arith.index_cast %c0_i32_12 : i32 to index
    %c0_26 = arith.constant 0 : index
    %c0_27 = arith.constant 0 : index
    %72 = vector.load %arg3[%71, %c0_26, %c0_27] : memref<8x8x128xf32, #tpu.memory_space<vmem>>, vector<1x8x128xf32>
    %73 = vector.shape_cast %72 : vector<1x8x128xf32> to vector<8x128xf32>
    %74 = arith.mulf %50, %70 : vector<8x128xf32>
    %75 = arith.addf %73, %74 : vector<8x128xf32>
    %76 = math.tanh %75 : vector<8x128xf32>
    %cst_28 = arith.constant 1.000000e+00 : f32
    %77 = vector.broadcast %cst_28 : f32 to vector<8x128xf32>
    %78 = arith.subf %77, %49 : vector<8x128xf32>
    %79 = arith.mulf %78, %19 : vector<8x128xf32>
    %80 = arith.mulf %49, %76 : vector<8x128xf32>
    %81 = arith.addf %79, %80 : vector<8x128xf32>
    %82 = arith.index_cast %c0_i32_12 : i32 to index
    %c0_29 = arith.constant 0 : index
    %c0_30 = arith.constant 0 : index
    %83 = vector.load %arg7[%82, %c0_29, %c0_30] : memref<8x8x128xf32, #tpu.memory_space<vmem>>, vector<1x8x128xf32>
    %84 = vector.shape_cast %83 : vector<1x8x128xf32> to vector<8x128xf32>
    %85 = vector.shape_cast %81 : vector<8x128xf32> to vector<1x8x128xf32>
    tpu.vector_store %arg7[%82, %c0_29, %c0_30], %85 {strides = array<i32>} : memref<8x8x128xf32, #tpu.memory_space<vmem>>, vector<1x8x128xf32>,
    %c1_i32 = arith.constant 1 : i32
    %cst_31 = arith.constant dense<0.000000e+00> : vector<8x384xf32>
    %86 = tpu.matmul %81, %3, %cst_31 {dimension_numbers = #tpu.dot_dimension_numbers<[1], [0], [0], [1], [0, 0, 1, 1], [], []>} : vector<8x128xf32>, vector<128x384xf32>, vector<8x384xf32> -> vector<8x384xf32>
    %87 = vector.extract_strided_slice %86 {offsets = [0, 0], sizes = [8, 256], strides = [1, 1]} : vector<8x384xf32> to vector<8x256xf32>
    %cst_32 = arith.constant dense<0.000000e+00> : vector<8xf32>
    %88 = vector.multi_reduction <add>, %87, %cst_32 [1] : vector<8x256xf32> to vector<8xf32>
    %89 = vector.shape_cast %88 : vector<8xf32> to vector<8x1xf32>
    %cst_33 = arith.constant 1.562500e-02 : f32
    %90 = vector.broadcast %cst_33 : f32 to vector<8x1xf32>
    %91 = arith.mulf %89, %90 : vector<8x1xf32>
    %92 = vector.broadcast %91 : vector<8x1xf32> to vector<8x256xf32>
    %93 = arith.subf %87, %92 : vector<8x256xf32>
    %94 = arith.mulf %93, %15 : vector<8x256xf32>
    %95 = arith.mulf %94, %94 : vector<8x256xf32>
    %cst_34 = arith.constant dense<0.000000e+00> : vector<8xf32>
    %96 = vector.multi_reduction <add>, %95, %cst_34 [1] : vector<8x256xf32> to vector<8xf32>
    %97 = vector.shape_cast %96 : vector<8xf32> to vector<8x1xf32>
    %cst_35 = arith.constant 1.562500e-02 : f32
    %98 = vector.broadcast %cst_35 : f32 to vector<8x1xf32>
    %99 = arith.mulf %97, %98 : vector<8x1xf32>
    %cst_36 = arith.constant 9.99999974E-6 : f32
    %100 = vector.broadcast %cst_36 : f32 to vector<8x1xf32>
    %101 = arith.addf %99, %100 : vector<8x1xf32>
    %102 = math.rsqrt %101 : vector<8x1xf32>
    %103 = vector.broadcast %102 : vector<8x1xf32> to vector<8x256xf32>
    %104 = arith.mulf %93, %103 : vector<8x256xf32>
    %105 = arith.mulf %104, %6 : vector<8x256xf32>
    %106 = arith.index_cast %c1_i32 : i32 to index
    %c0_37 = arith.constant 0 : index
    %c0_38 = arith.constant 0 : index
    %107 = vector.load %arg2[%106, %c0_37, %c0_38] : memref<8x8x256xf32, #tpu.memory_space<vmem>>, vector<1x8x256xf32>
    %108 = vector.shape_cast %107 : vector<1x8x256xf32> to vector<8x256xf32>
    %109 = arith.addf %105, %108 : vector<8x256xf32>
    %110 = arith.negf %109 : vector<8x256xf32>
    %111 = math.exp %110 : vector<8x256xf32>
    %cst_39 = arith.constant 1.000000e+00 : f32
    %112 = vector.broadcast %cst_39 : f32 to vector<8x256xf32>
    %113 = arith.addf %112, %111 : vector<8x256xf32>
    %114 = arith.divf %112, %113 : vector<8x256xf32>
    %115 = vector.extract_strided_slice %114 {offsets = [0, 0], sizes = [8, 128], strides = [1, 1]} : vector<8x256xf32> to vector<8x128xf32>
    %116 = vector.extract_strided_slice %114 {offsets = [0, 128], sizes = [8, 128], strides = [1, 1]} : vector<8x256xf32> to vector<8x128xf32>
    %117 = vector.extract_strided_slice %86 {offsets = [0, 256], sizes = [8, 128], strides = [1, 1]} : vector<8x384xf32> to vector<8x128xf32>
    %cst_40 = arith.constant dense<0.000000e+00> : vector<8xf32>
    %118 = vector.multi_reduction <add>, %117, %cst_40 [1] : vector<8x128xf32> to vector<8xf32>
    %119 = vector.shape_cast %118 : vector<8xf32> to vector<8x1xf32>
    %cst_41 = arith.constant 3.125000e-02 : f32
    %120 = vector.broadcast %cst_41 : f32 to vector<8x1xf32>
    %121 = arith.mulf %119, %120 : vector<8x1xf32>
    %122 = vector.broadcast %121 : vector<8x1xf32> to vector<8x128xf32>
    %123 = arith.subf %117, %122 : vector<8x128xf32>
    %124 = arith.mulf %123, %18 : vector<8x128xf32>
    %125 = arith.mulf %124, %124 : vector<8x128xf32>
    %cst_42 = arith.constant dense<0.000000e+00> : vector<8xf32>
    %126 = vector.multi_reduction <add>, %125, %cst_42 [1] : vector<8x128xf32> to vector<8xf32>
    %127 = vector.shape_cast %126 : vector<8xf32> to vector<8x1xf32>
    %cst_43 = arith.constant 3.125000e-02 : f32
    %128 = vector.broadcast %cst_43 : f32 to vector<8x1xf32>
    %129 = arith.mulf %127, %128 : vector<8x1xf32>
    %cst_44 = arith.constant 9.99999974E-6 : f32
    %130 = vector.broadcast %cst_44 : f32 to vector<8x1xf32>
    %131 = arith.addf %129, %130 : vector<8x1xf32>
    %132 = math.rsqrt %131 : vector<8x1xf32>
    %133 = vector.broadcast %132 : vector<8x1xf32> to vector<8x128xf32>
    %134 = arith.mulf %123, %133 : vector<8x128xf32>
    %135 = arith.mulf %134, %9 : vector<8x128xf32>
    %136 = arith.addf %135, %12 : vector<8x128xf32>
    %137 = arith.index_cast %c1_i32 : i32 to index
    %c0_45 = arith.constant 0 : index
    %c0_46 = arith.constant 0 : index
    %138 = vector.load %arg3[%137, %c0_45, %c0_46] : memref<8x8x128xf32, #tpu.memory_space<vmem>>, vector<1x8x128xf32>
    %139 = vector.shape_cast %138 : vector<1x8x128xf32> to vector<8x128xf32>
    %140 = arith.mulf %116, %136 : vector<8x128xf32>
    %141 = arith.addf %139, %140 : vector<8x128xf32>
    %142 = math.tanh %141 : vector<8x128xf32>
    %cst_47 = arith.constant 1.000000e+00 : f32
    %143 = vector.broadcast %cst_47 : f32 to vector<8x128xf32>
    %144 = arith.subf %143, %115 : vector<8x128xf32>
    %145 = arith.mulf %144, %81 : vector<8x128xf32>
    %146 = arith.mulf %115, %142 : vector<8x128xf32>
    %147 = arith.addf %145, %146 : vector<8x128xf32>
    %148 = arith.index_cast %c1_i32 : i32 to index
    %c0_48 = arith.constant 0 : index
    %c0_49 = arith.constant 0 : index
    %149 = vector.load %arg7[%148, %c0_48, %c0_49] : memref<8x8x128xf32, #tpu.memory_space<vmem>>, vector<1x8x128xf32>
    %150 = vector.shape_cast %149 : vector<1x8x128xf32> to vector<8x128xf32>
    %151 = vector.shape_cast %147 : vector<8x128xf32> to vector<1x8x128xf32>
    tpu.vector_store %arg7[%148, %c0_48, %c0_49], %151 {strides = array<i32>} : memref<8x8x128xf32, #tpu.memory_space<vmem>>, vector<1x8x128xf32>,
    %c2_i32 = arith.constant 2 : i32
    %cst_50 = arith.constant dense<0.000000e+00> : vector<8x384xf32>
    %152 = tpu.matmul %147, %3, %cst_50 {dimension_numbers = #tpu.dot_dimension_numbers<[1], [0], [0], [1], [0, 0, 1, 1], [], []>} : vector<8x128xf32>, vector<128x384xf32>, vector<8x384xf32> -> vector<8x384xf32>
    %153 = vector.extract_strided_slice %152 {offsets = [0, 0], sizes = [8, 256], strides = [1, 1]} : vector<8x384xf32> to vector<8x256xf32>
    %cst_51 = arith.constant dense<0.000000e+00> : vector<8xf32>
    %154 = vector.multi_reduction <add>, %153, %cst_51 [1] : vector<8x256xf32> to vector<8xf32>
    %155 = vector.shape_cast %154 : vector<8xf32> to vector<8x1xf32>
    %cst_52 = arith.constant 1.562500e-02 : f32
    %156 = vector.broadcast %cst_52 : f32 to vector<8x1xf32>
    %157 = arith.mulf %155, %156 : vector<8x1xf32>
    %158 = vector.broadcast %157 : vector<8x1xf32> to vector<8x256xf32>
    %159 = arith.subf %153, %158 : vector<8x256xf32>
    %160 = arith.mulf %159, %15 : vector<8x256xf32>
    %161 = arith.mulf %160, %160 : vector<8x256xf32>
    %cst_53 = arith.constant dense<0.000000e+00> : vector<8xf32>
    %162 = vector.multi_reduction <add>, %161, %cst_53 [1] : vector<8x256xf32> to vector<8xf32>
    %163 = vector.shape_cast %162 : vector<8xf32> to vector<8x1xf32>
    %cst_54 = arith.constant 1.562500e-02 : f32
    %164 = vector.broadcast %cst_54 : f32 to vector<8x1xf32>
    %165 = arith.mulf %163, %164 : vector<8x1xf32>
    %cst_55 = arith.constant 9.99999974E-6 : f32
    %166 = vector.broadcast %cst_55 : f32 to vector<8x1xf32>
    %167 = arith.addf %165, %166 : vector<8x1xf32>
    %168 = math.rsqrt %167 : vector<8x1xf32>
    %169 = vector.broadcast %168 : vector<8x1xf32> to vector<8x256xf32>
    %170 = arith.mulf %159, %169 : vector<8x256xf32>
    %171 = arith.mulf %170, %6 : vector<8x256xf32>
    %172 = arith.index_cast %c2_i32 : i32 to index
    %c0_56 = arith.constant 0 : index
    %c0_57 = arith.constant 0 : index
    %173 = vector.load %arg2[%172, %c0_56, %c0_57] : memref<8x8x256xf32, #tpu.memory_space<vmem>>, vector<1x8x256xf32>
    %174 = vector.shape_cast %173 : vector<1x8x256xf32> to vector<8x256xf32>
    %175 = arith.addf %171, %174 : vector<8x256xf32>
    %176 = arith.negf %175 : vector<8x256xf32>
    %177 = math.exp %176 : vector<8x256xf32>
    %cst_58 = arith.constant 1.000000e+00 : f32
    %178 = vector.broadcast %cst_58 : f32 to vector<8x256xf32>
    %179 = arith.addf %178, %177 : vector<8x256xf32>
    %180 = arith.divf %178, %179 : vector<8x256xf32>
    %181 = vector.extract_strided_slice %180 {offsets = [0, 0], sizes = [8, 128], strides = [1, 1]} : vector<8x256xf32> to vector<8x128xf32>
    %182 = vector.extract_strided_slice %180 {offsets = [0, 128], sizes = [8, 128], strides = [1, 1]} : vector<8x256xf32> to vector<8x128xf32>
    %183 = vector.extract_strided_slice %152 {offsets = [0, 256], sizes = [8, 128], strides = [1, 1]} : vector<8x384xf32> to vector<8x128xf32>
    %cst_59 = arith.constant dense<0.000000e+00> : vector<8xf32>
    %184 = vector.multi_reduction <add>, %183, %cst_59 [1] : vector<8x128xf32> to vector<8xf32>
    %185 = vector.shape_cast %184 : vector<8xf32> to vector<8x1xf32>
    %cst_60 = arith.constant 3.125000e-02 : f32
    %186 = vector.broadcast %cst_60 : f32 to vector<8x1xf32>
    %187 = arith.mulf %185, %186 : vector<8x1xf32>
    %188 = vector.broadcast %187 : vector<8x1xf32> to vector<8x128xf32>
    %189 = arith.subf %183, %188 : vector<8x128xf32>
    %190 = arith.mulf %189, %18 : vector<8x128xf32>
    %191 = arith.mulf %190, %190 : vector<8x128xf32>
    %cst_61 = arith.constant dense<0.000000e+00> : vector<8xf32>
    %192 = vector.multi_reduction <add>, %191, %cst_61 [1] : vector<8x128xf32> to vector<8xf32>
    %193 = vector.shape_cast %192 : vector<8xf32> to vector<8x1xf32>
    %cst_62 = arith.constant 3.125000e-02 : f32
    %194 = vector.broadcast %cst_62 : f32 to vector<8x1xf32>
    %195 = arith.mulf %193, %194 : vector<8x1xf32>
    %cst_63 = arith.constant 9.99999974E-6 : f32
    %196 = vector.broadcast %cst_63 : f32 to vector<8x1xf32>
    %197 = arith.addf %195, %196 : vector<8x1xf32>
    %198 = math.rsqrt %197 : vector<8x1xf32>
    %199 = vector.broadcast %198 : vector<8x1xf32> to vector<8x128xf32>
    %200 = arith.mulf %189, %199 : vector<8x128xf32>
    %201 = arith.mulf %200, %9 : vector<8x128xf32>
    %202 = arith.addf %201, %12 : vector<8x128xf32>
    %203 = arith.index_cast %c2_i32 : i32 to index
    %c0_64 = arith.constant 0 : index
    %c0_65 = arith.constant 0 : index
    %204 = vector.load %arg3[%203, %c0_64, %c0_65] : memref<8x8x128xf32, #tpu.memory_space<vmem>>, vector<1x8x128xf32>
    %205 = vector.shape_cast %204 : vector<1x8x128xf32> to vector<8x128xf32>
    %206 = arith.mulf %182, %202 : vector<8x128xf32>
    %207 = arith.addf %205, %206 : vector<8x128xf32>
    %208 = math.tanh %207 : vector<8x128xf32>
    %cst_66 = arith.constant 1.000000e+00 : f32
    %209 = vector.broadcast %cst_66 : f32 to vector<8x128xf32>
    %210 = arith.subf %209, %181 : vector<8x128xf32>
    %211 = arith.mulf %210, %147 : vector<8x128xf32>
    %212 = arith.mulf %181, %208 : vector<8x128xf32>
    %213 = arith.addf %211, %212 : vector<8x128xf32>
    %214 = arith.index_cast %c2_i32 : i32 to index
    %c0_67 = arith.constant 0 : index
    %c0_68 = arith.constant 0 : index
    %215 = vector.load %arg7[%214, %c0_67, %c0_68] : memref<8x8x128xf32, #tpu.memory_space<vmem>>, vector<1x8x128xf32>
    %216 = vector.shape_cast %215 : vector<1x8x128xf32> to vector<8x128xf32>
    %217 = vector.shape_cast %213 : vector<8x128xf32> to vector<1x8x128xf32>
    tpu.vector_store %arg7[%214, %c0_67, %c0_68], %217 {strides = array<i32>} : memref<8x8x128xf32, #tpu.memory_space<vmem>>, vector<1x8x128xf32>,
    %c3_i32 = arith.constant 3 : i32
    %cst_69 = arith.constant dense<0.000000e+00> : vector<8x384xf32>
    %218 = tpu.matmul %213, %3, %cst_69 {dimension_numbers = #tpu.dot_dimension_numbers<[1], [0], [0], [1], [0, 0, 1, 1], [], []>} : vector<8x128xf32>, vector<128x384xf32>, vector<8x384xf32> -> vector<8x384xf32>
    %219 = vector.extract_strided_slice %218 {offsets = [0, 0], sizes = [8, 256], strides = [1, 1]} : vector<8x384xf32> to vector<8x256xf32>
    %cst_70 = arith.constant dense<0.000000e+00> : vector<8xf32>
    %220 = vector.multi_reduction <add>, %219, %cst_70 [1] : vector<8x256xf32> to vector<8xf32>
    %221 = vector.shape_cast %220 : vector<8xf32> to vector<8x1xf32>
    %cst_71 = arith.constant 1.562500e-02 : f32
    %222 = vector.broadcast %cst_71 : f32 to vector<8x1xf32>
    %223 = arith.mulf %221, %222 : vector<8x1xf32>
    %224 = vector.broadcast %223 : vector<8x1xf32> to vector<8x256xf32>
    %225 = arith.subf %219, %224 : vector<8x256xf32>
    %226 = arith.mulf %225, %15 : vector<8x256xf32>
    %227 = arith.mulf %226, %226 : vector<8x256xf32>
    %cst_72 = arith.constant dense<0.000000e+00> : vector<8xf32>
    %228 = vector.multi_reduction <add>, %227, %cst_72 [1] : vector<8x256xf32> to vector<8xf32>
    %229 = vector.shape_cast %228 : vector<8xf32> to vector<8x1xf32>
    %cst_73 = arith.constant 1.562500e-02 : f32
    %230 = vector.broadcast %cst_73 : f32 to vector<8x1xf32>
    %231 = arith.mulf %229, %230 : vector<8x1xf32>
    %cst_74 = arith.constant 9.99999974E-6 : f32
    %232 = vector.broadcast %cst_74 : f32 to vector<8x1xf32>
    %233 = arith.addf %231, %232 : vector<8x1xf32>
    %234 = math.rsqrt %233 : vector<8x1xf32>
    %235 = vector.broadcast %234 : vector<8x1xf32> to vector<8x256xf32>
    %236 = arith.mulf %225, %235 : vector<8x256xf32>
    %237 = arith.mulf %236, %6 : vector<8x256xf32>
    %238 = arith.index_cast %c3_i32 : i32 to index
    %c0_75 = arith.constant 0 : index
    %c0_76 = arith.constant 0 : index
    %239 = vector.load %arg2[%238, %c0_75, %c0_76] : memref<8x8x256xf32, #tpu.memory_space<vmem>>, vector<1x8x256xf32>
    %240 = vector.shape_cast %239 : vector<1x8x256xf32> to vector<8x256xf32>
    %241 = arith.addf %237, %240 : vector<8x256xf32>
    %242 = arith.negf %241 : vector<8x256xf32>
    %243 = math.exp %242 : vector<8x256xf32>
    %cst_77 = arith.constant 1.000000e+00 : f32
    %244 = vector.broadcast %cst_77 : f32 to vector<8x256xf32>
    %245 = arith.addf %244, %243 : vector<8x256xf32>
    %246 = arith.divf %244, %245 : vector<8x256xf32>
    %247 = vector.extract_strided_slice %246 {offsets = [0, 0], sizes = [8, 128], strides = [1, 1]} : vector<8x256xf32> to vector<8x128xf32>
    %248 = vector.extract_strided_slice %246 {offsets = [0, 128], sizes = [8, 128], strides = [1, 1]} : vector<8x256xf32> to vector<8x128xf32>
    %249 = vector.extract_strided_slice %218 {offsets = [0, 256], sizes = [8, 128], strides = [1, 1]} : vector<8x384xf32> to vector<8x128xf32>
    %cst_78 = arith.constant dense<0.000000e+00> : vector<8xf32>
    %250 = vector.multi_reduction <add>, %249, %cst_78 [1] : vector<8x128xf32> to vector<8xf32>
    %251 = vector.shape_cast %250 : vector<8xf32> to vector<8x1xf32>
    %cst_79 = arith.constant 3.125000e-02 : f32
    %252 = vector.broadcast %cst_79 : f32 to vector<8x1xf32>
    %253 = arith.mulf %251, %252 : vector<8x1xf32>
    %254 = vector.broadcast %253 : vector<8x1xf32> to vector<8x128xf32>
    %255 = arith.subf %249, %254 : vector<8x128xf32>
    %256 = arith.mulf %255, %18 : vector<8x128xf32>
    %257 = arith.mulf %256, %256 : vector<8x128xf32>
    %cst_80 = arith.constant dense<0.000000e+00> : vector<8xf32>
    %258 = vector.multi_reduction <add>, %257, %cst_80 [1] : vector<8x128xf32> to vector<8xf32>
    %259 = vector.shape_cast %258 : vector<8xf32> to vector<8x1xf32>
    %cst_81 = arith.constant 3.125000e-02 : f32
    %260 = vector.broadcast %cst_81 : f32 to vector<8x1xf32>
    %261 = arith.mulf %259, %260 : vector<8x1xf32>
    %cst_82 = arith.constant 9.99999974E-6 : f32
    %262 = vector.broadcast %cst_82 : f32 to vector<8x1xf32>
    %263 = arith.addf %261, %262 : vector<8x1xf32>
    %264 = math.rsqrt %263 : vector<8x1xf32>
    %265 = vector.broadcast %264 : vector<8x1xf32> to vector<8x128xf32>
    %266 = arith.mulf %255, %265 : vector<8x128xf32>
    %267 = arith.mulf %266, %9 : vector<8x128xf32>
    %268 = arith.addf %267, %12 : vector<8x128xf32>
    %269 = arith.index_cast %c3_i32 : i32 to index
    %c0_83 = arith.constant 0 : index
    %c0_84 = arith.constant 0 : index
    %270 = vector.load %arg3[%269, %c0_83, %c0_84] : memref<8x8x128xf32, #tpu.memory_space<vmem>>, vector<1x8x128xf32>
    %271 = vector.shape_cast %270 : vector<1x8x128xf32> to vector<8x128xf32>
    %272 = arith.mulf %248, %268 : vector<8x128xf32>
    %273 = arith.addf %271, %272 : vector<8x128xf32>
    %274 = math.tanh %273 : vector<8x128xf32>
    %cst_85 = arith.constant 1.000000e+00 : f32
    %275 = vector.broadcast %cst_85 : f32 to vector<8x128xf32>
    %276 = arith.subf %275, %247 : vector<8x128xf32>
    %277 = arith.mulf %276, %213 : vector<8x128xf32>
    %278 = arith.mulf %247, %274 : vector<8x128xf32>
    %279 = arith.addf %277, %278 : vector<8x128xf32>
    %280 = arith.index_cast %c3_i32 : i32 to index
    %c0_86 = arith.constant 0 : index
    %c0_87 = arith.constant 0 : index
    %281 = vector.load %arg7[%280, %c0_86, %c0_87] : memref<8x8x128xf32, #tpu.memory_space<vmem>>, vector<1x8x128xf32>
    %282 = vector.shape_cast %281 : vector<1x8x128xf32> to vector<8x128xf32>
    %283 = vector.shape_cast %279 : vector<8x128xf32> to vector<1x8x128xf32>
    tpu.vector_store %arg7[%280, %c0_86, %c0_87], %283 {strides = array<i32>} : memref<8x8x128xf32, #tpu.memory_space<vmem>>, vector<1x8x128xf32>,
    %c4_i32 = arith.constant 4 : i32
    %cst_88 = arith.constant dense<0.000000e+00> : vector<8x384xf32>
    %284 = tpu.matmul %279, %3, %cst_88 {dimension_numbers = #tpu.dot_dimension_numbers<[1], [0], [0], [1], [0, 0, 1, 1], [], []>} : vector<8x128xf32>, vector<128x384xf32>, vector<8x384xf32> -> vector<8x384xf32>
    %285 = vector.extract_strided_slice %284 {offsets = [0, 0], sizes = [8, 256], strides = [1, 1]} : vector<8x384xf32> to vector<8x256xf32>
    %cst_89 = arith.constant dense<0.000000e+00> : vector<8xf32>
    %286 = vector.multi_reduction <add>, %285, %cst_89 [1] : vector<8x256xf32> to vector<8xf32>
    %287 = vector.shape_cast %286 : vector<8xf32> to vector<8x1xf32>
    %cst_90 = arith.constant 1.562500e-02 : f32
    %288 = vector.broadcast %cst_90 : f32 to vector<8x1xf32>
    %289 = arith.mulf %287, %288 : vector<8x1xf32>
    %290 = vector.broadcast %289 : vector<8x1xf32> to vector<8x256xf32>
    %291 = arith.subf %285, %290 : vector<8x256xf32>
    %292 = arith.mulf %291, %15 : vector<8x256xf32>
    %293 = arith.mulf %292, %292 : vector<8x256xf32>
    %cst_91 = arith.constant dense<0.000000e+00> : vector<8xf32>
    %294 = vector.multi_reduction <add>, %293, %cst_91 [1] : vector<8x256xf32> to vector<8xf32>
    %295 = vector.shape_cast %294 : vector<8xf32> to vector<8x1xf32>
    %cst_92 = arith.constant 1.562500e-02 : f32
    %296 = vector.broadcast %cst_92 : f32 to vector<8x1xf32>
    %297 = arith.mulf %295, %296 : vector<8x1xf32>
    %cst_93 = arith.constant 9.99999974E-6 : f32
    %298 = vector.broadcast %cst_93 : f32 to vector<8x1xf32>
    %299 = arith.addf %297, %298 : vector<8x1xf32>
    %300 = math.rsqrt %299 : vector<8x1xf32>
    %301 = vector.broadcast %300 : vector<8x1xf32> to vector<8x256xf32>
    %302 = arith.mulf %291, %301 : vector<8x256xf32>
    %303 = arith.mulf %302, %6 : vector<8x256xf32>
    %304 = arith.index_cast %c4_i32 : i32 to index
    %c0_94 = arith.constant 0 : index
    %c0_95 = arith.constant 0 : index
    %305 = vector.load %arg2[%304, %c0_94, %c0_95] : memref<8x8x256xf32, #tpu.memory_space<vmem>>, vector<1x8x256xf32>
    %306 = vector.shape_cast %305 : vector<1x8x256xf32> to vector<8x256xf32>
    %307 = arith.addf %303, %306 : vector<8x256xf32>
    %308 = arith.negf %307 : vector<8x256xf32>
    %309 = math.exp %308 : vector<8x256xf32>
    %cst_96 = arith.constant 1.000000e+00 : f32
    %310 = vector.broadcast %cst_96 : f32 to vector<8x256xf32>
    %311 = arith.addf %310, %309 : vector<8x256xf32>
    %312 = arith.divf %310, %311 : vector<8x256xf32>
    %313 = vector.extract_strided_slice %312 {offsets = [0, 0], sizes = [8, 128], strides = [1, 1]} : vector<8x256xf32> to vector<8x128xf32>
    %314 = vector.extract_strided_slice %312 {offsets = [0, 128], sizes = [8, 128], strides = [1, 1]} : vector<8x256xf32> to vector<8x128xf32>
    %315 = vector.extract_strided_slice %284 {offsets = [0, 256], sizes = [8, 128], strides = [1, 1]} : vector<8x384xf32> to vector<8x128xf32>
    %cst_97 = arith.constant dense<0.000000e+00> : vector<8xf32>
    %316 = vector.multi_reduction <add>, %315, %cst_97 [1] : vector<8x128xf32> to vector<8xf32>
    %317 = vector.shape_cast %316 : vector<8xf32> to vector<8x1xf32>
    %cst_98 = arith.constant 3.125000e-02 : f32
    %318 = vector.broadcast %cst_98 : f32 to vector<8x1xf32>
    %319 = arith.mulf %317, %318 : vector<8x1xf32>
    %320 = vector.broadcast %319 : vector<8x1xf32> to vector<8x128xf32>
    %321 = arith.subf %315, %320 : vector<8x128xf32>
    %322 = arith.mulf %321, %18 : vector<8x128xf32>
    %323 = arith.mulf %322, %322 : vector<8x128xf32>
    %cst_99 = arith.constant dense<0.000000e+00> : vector<8xf32>
    %324 = vector.multi_reduction <add>, %323, %cst_99 [1] : vector<8x128xf32> to vector<8xf32>
    %325 = vector.shape_cast %324 : vector<8xf32> to vector<8x1xf32>
    %cst_100 = arith.constant 3.125000e-02 : f32
    %326 = vector.broadcast %cst_100 : f32 to vector<8x1xf32>
    %327 = arith.mulf %325, %326 : vector<8x1xf32>
    %cst_101 = arith.constant 9.99999974E-6 : f32
    %328 = vector.broadcast %cst_101 : f32 to vector<8x1xf32>
    %329 = arith.addf %327, %328 : vector<8x1xf32>
    %330 = math.rsqrt %329 : vector<8x1xf32>
    %331 = vector.broadcast %330 : vector<8x1xf32> to vector<8x128xf32>
    %332 = arith.mulf %321, %331 : vector<8x128xf32>
    %333 = arith.mulf %332, %9 : vector<8x128xf32>
    %334 = arith.addf %333, %12 : vector<8x128xf32>
    %335 = arith.index_cast %c4_i32 : i32 to index
    %c0_102 = arith.constant 0 : index
    %c0_103 = arith.constant 0 : index
    %336 = vector.load %arg3[%335, %c0_102, %c0_103] : memref<8x8x128xf32, #tpu.memory_space<vmem>>, vector<1x8x128xf32>
    %337 = vector.shape_cast %336 : vector<1x8x128xf32> to vector<8x128xf32>
    %338 = arith.mulf %314, %334 : vector<8x128xf32>
    %339 = arith.addf %337, %338 : vector<8x128xf32>
    %340 = math.tanh %339 : vector<8x128xf32>
    %cst_104 = arith.constant 1.000000e+00 : f32
    %341 = vector.broadcast %cst_104 : f32 to vector<8x128xf32>
    %342 = arith.subf %341, %313 : vector<8x128xf32>
    %343 = arith.mulf %342, %279 : vector<8x128xf32>
    %344 = arith.mulf %313, %340 : vector<8x128xf32>
    %345 = arith.addf %343, %344 : vector<8x128xf32>
    %346 = arith.index_cast %c4_i32 : i32 to index
    %c0_105 = arith.constant 0 : index
    %c0_106 = arith.constant 0 : index
    %347 = vector.load %arg7[%346, %c0_105, %c0_106] : memref<8x8x128xf32, #tpu.memory_space<vmem>>, vector<1x8x128xf32>
    %348 = vector.shape_cast %347 : vector<1x8x128xf32> to vector<8x128xf32>
    %349 = vector.shape_cast %345 : vector<8x128xf32> to vector<1x8x128xf32>
    tpu.vector_store %arg7[%346, %c0_105, %c0_106], %349 {strides = array<i32>} : memref<8x8x128xf32, #tpu.memory_space<vmem>>, vector<1x8x128xf32>,
    %c5_i32 = arith.constant 5 : i32
    %cst_107 = arith.constant dense<0.000000e+00> : vector<8x384xf32>
    %350 = tpu.matmul %345, %3, %cst_107 {dimension_numbers = #tpu.dot_dimension_numbers<[1], [0], [0], [1], [0, 0, 1, 1], [], []>} : vector<8x128xf32>, vector<128x384xf32>, vector<8x384xf32> -> vector<8x384xf32>
    %351 = vector.extract_strided_slice %350 {offsets = [0, 0], sizes = [8, 256], strides = [1, 1]} : vector<8x384xf32> to vector<8x256xf32>
    %cst_108 = arith.constant dense<0.000000e+00> : vector<8xf32>
    %352 = vector.multi_reduction <add>, %351, %cst_108 [1] : vector<8x256xf32> to vector<8xf32>
    %353 = vector.shape_cast %352 : vector<8xf32> to vector<8x1xf32>
    %cst_109 = arith.constant 1.562500e-02 : f32
    %354 = vector.broadcast %cst_109 : f32 to vector<8x1xf32>
    %355 = arith.mulf %353, %354 : vector<8x1xf32>
    %356 = vector.broadcast %355 : vector<8x1xf32> to vector<8x256xf32>
    %357 = arith.subf %351, %356 : vector<8x256xf32>
    %358 = arith.mulf %357, %15 : vector<8x256xf32>
    %359 = arith.mulf %358, %358 : vector<8x256xf32>
    %cst_110 = arith.constant dense<0.000000e+00> : vector<8xf32>
    %360 = vector.multi_reduction <add>, %359, %cst_110 [1] : vector<8x256xf32> to vector<8xf32>
    %361 = vector.shape_cast %360 : vector<8xf32> to vector<8x1xf32>
    %cst_111 = arith.constant 1.562500e-02 : f32
    %362 = vector.broadcast %cst_111 : f32 to vector<8x1xf32>
    %363 = arith.mulf %361, %362 : vector<8x1xf32>
    %cst_112 = arith.constant 9.99999974E-6 : f32
    %364 = vector.broadcast %cst_112 : f32 to vector<8x1xf32>
    %365 = arith.addf %363, %364 : vector<8x1xf32>
    %366 = math.rsqrt %365 : vector<8x1xf32>
    %367 = vector.broadcast %366 : vector<8x1xf32> to vector<8x256xf32>
    %368 = arith.mulf %357, %367 : vector<8x256xf32>
    %369 = arith.mulf %368, %6 : vector<8x256xf32>
    %370 = arith.index_cast %c5_i32 : i32 to index
    %c0_113 = arith.constant 0 : index
    %c0_114 = arith.constant 0 : index
    %371 = vector.load %arg2[%370, %c0_113, %c0_114] : memref<8x8x256xf32, #tpu.memory_space<vmem>>, vector<1x8x256xf32>
    %372 = vector.shape_cast %371 : vector<1x8x256xf32> to vector<8x256xf32>
    %373 = arith.addf %369, %372 : vector<8x256xf32>
    %374 = arith.negf %373 : vector<8x256xf32>
    %375 = math.exp %374 : vector<8x256xf32>
    %cst_115 = arith.constant 1.000000e+00 : f32
    %376 = vector.broadcast %cst_115 : f32 to vector<8x256xf32>
    %377 = arith.addf %376, %375 : vector<8x256xf32>
    %378 = arith.divf %376, %377 : vector<8x256xf32>
    %379 = vector.extract_strided_slice %378 {offsets = [0, 0], sizes = [8, 128], strides = [1, 1]} : vector<8x256xf32> to vector<8x128xf32>
    %380 = vector.extract_strided_slice %378 {offsets = [0, 128], sizes = [8, 128], strides = [1, 1]} : vector<8x256xf32> to vector<8x128xf32>
    %381 = vector.extract_strided_slice %350 {offsets = [0, 256], sizes = [8, 128], strides = [1, 1]} : vector<8x384xf32> to vector<8x128xf32>
    %cst_116 = arith.constant dense<0.000000e+00> : vector<8xf32>
    %382 = vector.multi_reduction <add>, %381, %cst_116 [1] : vector<8x128xf32> to vector<8xf32>
    %383 = vector.shape_cast %382 : vector<8xf32> to vector<8x1xf32>
    %cst_117 = arith.constant 3.125000e-02 : f32
    %384 = vector.broadcast %cst_117 : f32 to vector<8x1xf32>
    %385 = arith.mulf %383, %384 : vector<8x1xf32>
    %386 = vector.broadcast %385 : vector<8x1xf32> to vector<8x128xf32>
    %387 = arith.subf %381, %386 : vector<8x128xf32>
    %388 = arith.mulf %387, %18 : vector<8x128xf32>
    %389 = arith.mulf %388, %388 : vector<8x128xf32>
    %cst_118 = arith.constant dense<0.000000e+00> : vector<8xf32>
    %390 = vector.multi_reduction <add>, %389, %cst_118 [1] : vector<8x128xf32> to vector<8xf32>
    %391 = vector.shape_cast %390 : vector<8xf32> to vector<8x1xf32>
    %cst_119 = arith.constant 3.125000e-02 : f32
    %392 = vector.broadcast %cst_119 : f32 to vector<8x1xf32>
    %393 = arith.mulf %391, %392 : vector<8x1xf32>
    %cst_120 = arith.constant 9.99999974E-6 : f32
    %394 = vector.broadcast %cst_120 : f32 to vector<8x1xf32>
    %395 = arith.addf %393, %394 : vector<8x1xf32>
    %396 = math.rsqrt %395 : vector<8x1xf32>
    %397 = vector.broadcast %396 : vector<8x1xf32> to vector<8x128xf32>
    %398 = arith.mulf %387, %397 : vector<8x128xf32>
    %399 = arith.mulf %398, %9 : vector<8x128xf32>
    %400 = arith.addf %399, %12 : vector<8x128xf32>
    %401 = arith.index_cast %c5_i32 : i32 to index
    %c0_121 = arith.constant 0 : index
    %c0_122 = arith.constant 0 : index
    %402 = vector.load %arg3[%401, %c0_121, %c0_122] : memref<8x8x128xf32, #tpu.memory_space<vmem>>, vector<1x8x128xf32>
    %403 = vector.shape_cast %402 : vector<1x8x128xf32> to vector<8x128xf32>
    %404 = arith.mulf %380, %400 : vector<8x128xf32>
    %405 = arith.addf %403, %404 : vector<8x128xf32>
    %406 = math.tanh %405 : vector<8x128xf32>
    %cst_123 = arith.constant 1.000000e+00 : f32
    %407 = vector.broadcast %cst_123 : f32 to vector<8x128xf32>
    %408 = arith.subf %407, %379 : vector<8x128xf32>
    %409 = arith.mulf %408, %345 : vector<8x128xf32>
    %410 = arith.mulf %379, %406 : vector<8x128xf32>
    %411 = arith.addf %409, %410 : vector<8x128xf32>
    %412 = arith.index_cast %c5_i32 : i32 to index
    %c0_124 = arith.constant 0 : index
    %c0_125 = arith.constant 0 : index
    %413 = vector.load %arg7[%412, %c0_124, %c0_125] : memref<8x8x128xf32, #tpu.memory_space<vmem>>, vector<1x8x128xf32>
    %414 = vector.shape_cast %413 : vector<1x8x128xf32> to vector<8x128xf32>
    %415 = vector.shape_cast %411 : vector<8x128xf32> to vector<1x8x128xf32>
    tpu.vector_store %arg7[%412, %c0_124, %c0_125], %415 {strides = array<i32>} : memref<8x8x128xf32, #tpu.memory_space<vmem>>, vector<1x8x128xf32>,
    %c6_i32 = arith.constant 6 : i32
    %cst_126 = arith.constant dense<0.000000e+00> : vector<8x384xf32>
    %416 = tpu.matmul %411, %3, %cst_126 {dimension_numbers = #tpu.dot_dimension_numbers<[1], [0], [0], [1], [0, 0, 1, 1], [], []>} : vector<8x128xf32>, vector<128x384xf32>, vector<8x384xf32> -> vector<8x384xf32>
    %417 = vector.extract_strided_slice %416 {offsets = [0, 0], sizes = [8, 256], strides = [1, 1]} : vector<8x384xf32> to vector<8x256xf32>
    %cst_127 = arith.constant dense<0.000000e+00> : vector<8xf32>
    %418 = vector.multi_reduction <add>, %417, %cst_127 [1] : vector<8x256xf32> to vector<8xf32>
    %419 = vector.shape_cast %418 : vector<8xf32> to vector<8x1xf32>
    %cst_128 = arith.constant 1.562500e-02 : f32
    %420 = vector.broadcast %cst_128 : f32 to vector<8x1xf32>
    %421 = arith.mulf %419, %420 : vector<8x1xf32>
    %422 = vector.broadcast %421 : vector<8x1xf32> to vector<8x256xf32>
    %423 = arith.subf %417, %422 : vector<8x256xf32>
    %424 = arith.mulf %423, %15 : vector<8x256xf32>
    %425 = arith.mulf %424, %424 : vector<8x256xf32>
    %cst_129 = arith.constant dense<0.000000e+00> : vector<8xf32>
    %426 = vector.multi_reduction <add>, %425, %cst_129 [1] : vector<8x256xf32> to vector<8xf32>
    %427 = vector.shape_cast %426 : vector<8xf32> to vector<8x1xf32>
    %cst_130 = arith.constant 1.562500e-02 : f32
    %428 = vector.broadcast %cst_130 : f32 to vector<8x1xf32>
    %429 = arith.mulf %427, %428 : vector<8x1xf32>
    %cst_131 = arith.constant 9.99999974E-6 : f32
    %430 = vector.broadcast %cst_131 : f32 to vector<8x1xf32>
    %431 = arith.addf %429, %430 : vector<8x1xf32>
    %432 = math.rsqrt %431 : vector<8x1xf32>
    %433 = vector.broadcast %432 : vector<8x1xf32> to vector<8x256xf32>
    %434 = arith.mulf %423, %433 : vector<8x256xf32>
    %435 = arith.mulf %434, %6 : vector<8x256xf32>
    %436 = arith.index_cast %c6_i32 : i32 to index
    %c0_132 = arith.constant 0 : index
    %c0_133 = arith.constant 0 : index
    %437 = vector.load %arg2[%436, %c0_132, %c0_133] : memref<8x8x256xf32, #tpu.memory_space<vmem>>, vector<1x8x256xf32>
    %438 = vector.shape_cast %437 : vector<1x8x256xf32> to vector<8x256xf32>
    %439 = arith.addf %435, %438 : vector<8x256xf32>
    %440 = arith.negf %439 : vector<8x256xf32>
    %441 = math.exp %440 : vector<8x256xf32>
    %cst_134 = arith.constant 1.000000e+00 : f32
    %442 = vector.broadcast %cst_134 : f32 to vector<8x256xf32>
    %443 = arith.addf %442, %441 : vector<8x256xf32>
    %444 = arith.divf %442, %443 : vector<8x256xf32>
    %445 = vector.extract_strided_slice %444 {offsets = [0, 0], sizes = [8, 128], strides = [1, 1]} : vector<8x256xf32> to vector<8x128xf32>
    %446 = vector.extract_strided_slice %444 {offsets = [0, 128], sizes = [8, 128], strides = [1, 1]} : vector<8x256xf32> to vector<8x128xf32>
    %447 = vector.extract_strided_slice %416 {offsets = [0, 256], sizes = [8, 128], strides = [1, 1]} : vector<8x384xf32> to vector<8x128xf32>
    %cst_135 = arith.constant dense<0.000000e+00> : vector<8xf32>
    %448 = vector.multi_reduction <add>, %447, %cst_135 [1] : vector<8x128xf32> to vector<8xf32>
    %449 = vector.shape_cast %448 : vector<8xf32> to vector<8x1xf32>
    %cst_136 = arith.constant 3.125000e-02 : f32
    %450 = vector.broadcast %cst_136 : f32 to vector<8x1xf32>
    %451 = arith.mulf %449, %450 : vector<8x1xf32>
    %452 = vector.broadcast %451 : vector<8x1xf32> to vector<8x128xf32>
    %453 = arith.subf %447, %452 : vector<8x128xf32>
    %454 = arith.mulf %453, %18 : vector<8x128xf32>
    %455 = arith.mulf %454, %454 : vector<8x128xf32>
    %cst_137 = arith.constant dense<0.000000e+00> : vector<8xf32>
    %456 = vector.multi_reduction <add>, %455, %cst_137 [1] : vector<8x128xf32> to vector<8xf32>
    %457 = vector.shape_cast %456 : vector<8xf32> to vector<8x1xf32>
    %cst_138 = arith.constant 3.125000e-02 : f32
    %458 = vector.broadcast %cst_138 : f32 to vector<8x1xf32>
    %459 = arith.mulf %457, %458 : vector<8x1xf32>
    %cst_139 = arith.constant 9.99999974E-6 : f32
    %460 = vector.broadcast %cst_139 : f32 to vector<8x1xf32>
    %461 = arith.addf %459, %460 : vector<8x1xf32>
    %462 = math.rsqrt %461 : vector<8x1xf32>
    %463 = vector.broadcast %462 : vector<8x1xf32> to vector<8x128xf32>
    %464 = arith.mulf %453, %463 : vector<8x128xf32>
    %465 = arith.mulf %464, %9 : vector<8x128xf32>
    %466 = arith.addf %465, %12 : vector<8x128xf32>
    %467 = arith.index_cast %c6_i32 : i32 to index
    %c0_140 = arith.constant 0 : index
    %c0_141 = arith.constant 0 : index
    %468 = vector.load %arg3[%467, %c0_140, %c0_141] : memref<8x8x128xf32, #tpu.memory_space<vmem>>, vector<1x8x128xf32>
    %469 = vector.shape_cast %468 : vector<1x8x128xf32> to vector<8x128xf32>
    %470 = arith.mulf %446, %466 : vector<8x128xf32>
    %471 = arith.addf %469, %470 : vector<8x128xf32>
    %472 = math.tanh %471 : vector<8x128xf32>
    %cst_142 = arith.constant 1.000000e+00 : f32
    %473 = vector.broadcast %cst_142 : f32 to vector<8x128xf32>
    %474 = arith.subf %473, %445 : vector<8x128xf32>
    %475 = arith.mulf %474, %411 : vector<8x128xf32>
    %476 = arith.mulf %445, %472 : vector<8x128xf32>
    %477 = arith.addf %475, %476 : vector<8x128xf32>
    %478 = arith.index_cast %c6_i32 : i32 to index
    %c0_143 = arith.constant 0 : index
    %c0_144 = arith.constant 0 : index
    %479 = vector.load %arg7[%478, %c0_143, %c0_144] : memref<8x8x128xf32, #tpu.memory_space<vmem>>, vector<1x8x128xf32>
    %480 = vector.shape_cast %479 : vector<1x8x128xf32> to vector<8x128xf32>
    %481 = vector.shape_cast %477 : vector<8x128xf32> to vector<1x8x128xf32>
    tpu.vector_store %arg7[%478, %c0_143, %c0_144], %481 {strides = array<i32>} : memref<8x8x128xf32, #tpu.memory_space<vmem>>, vector<1x8x128xf32>,
    %c7_i32 = arith.constant 7 : i32
    %cst_145 = arith.constant dense<0.000000e+00> : vector<8x384xf32>
    %482 = tpu.matmul %477, %3, %cst_145 {dimension_numbers = #tpu.dot_dimension_numbers<[1], [0], [0], [1], [0, 0, 1, 1], [], []>} : vector<8x128xf32>, vector<128x384xf32>, vector<8x384xf32> -> vector<8x384xf32>
    %483 = vector.extract_strided_slice %482 {offsets = [0, 0], sizes = [8, 256], strides = [1, 1]} : vector<8x384xf32> to vector<8x256xf32>
    %cst_146 = arith.constant dense<0.000000e+00> : vector<8xf32>
    %484 = vector.multi_reduction <add>, %483, %cst_146 [1] : vector<8x256xf32> to vector<8xf32>
    %485 = vector.shape_cast %484 : vector<8xf32> to vector<8x1xf32>
    %cst_147 = arith.constant 1.562500e-02 : f32
    %486 = vector.broadcast %cst_147 : f32 to vector<8x1xf32>
    %487 = arith.mulf %485, %486 : vector<8x1xf32>
    %488 = vector.broadcast %487 : vector<8x1xf32> to vector<8x256xf32>
    %489 = arith.subf %483, %488 : vector<8x256xf32>
    %490 = arith.mulf %489, %15 : vector<8x256xf32>
    %491 = arith.mulf %490, %490 : vector<8x256xf32>
    %cst_148 = arith.constant dense<0.000000e+00> : vector<8xf32>
    %492 = vector.multi_reduction <add>, %491, %cst_148 [1] : vector<8x256xf32> to vector<8xf32>
    %493 = vector.shape_cast %492 : vector<8xf32> to vector<8x1xf32>
    %cst_149 = arith.constant 1.562500e-02 : f32
    %494 = vector.broadcast %cst_149 : f32 to vector<8x1xf32>
    %495 = arith.mulf %493, %494 : vector<8x1xf32>
    %cst_150 = arith.constant 9.99999974E-6 : f32
    %496 = vector.broadcast %cst_150 : f32 to vector<8x1xf32>
    %497 = arith.addf %495, %496 : vector<8x1xf32>
    %498 = math.rsqrt %497 : vector<8x1xf32>
    %499 = vector.broadcast %498 : vector<8x1xf32> to vector<8x256xf32>
    %500 = arith.mulf %489, %499 : vector<8x256xf32>
    %501 = arith.mulf %500, %6 : vector<8x256xf32>
    %502 = arith.index_cast %c7_i32 : i32 to index
    %c0_151 = arith.constant 0 : index
    %c0_152 = arith.constant 0 : index
    %503 = vector.load %arg2[%502, %c0_151, %c0_152] : memref<8x8x256xf32, #tpu.memory_space<vmem>>, vector<1x8x256xf32>
    %504 = vector.shape_cast %503 : vector<1x8x256xf32> to vector<8x256xf32>
    %505 = arith.addf %501, %504 : vector<8x256xf32>
    %506 = arith.negf %505 : vector<8x256xf32>
    %507 = math.exp %506 : vector<8x256xf32>
    %cst_153 = arith.constant 1.000000e+00 : f32
    %508 = vector.broadcast %cst_153 : f32 to vector<8x256xf32>
    %509 = arith.addf %508, %507 : vector<8x256xf32>
    %510 = arith.divf %508, %509 : vector<8x256xf32>
    %511 = vector.extract_strided_slice %510 {offsets = [0, 0], sizes = [8, 128], strides = [1, 1]} : vector<8x256xf32> to vector<8x128xf32>
    %512 = vector.extract_strided_slice %510 {offsets = [0, 128], sizes = [8, 128], strides = [1, 1]} : vector<8x256xf32> to vector<8x128xf32>
    %513 = vector.extract_strided_slice %482 {offsets = [0, 256], sizes = [8, 128], strides = [1, 1]} : vector<8x384xf32> to vector<8x128xf32>
    %cst_154 = arith.constant dense<0.000000e+00> : vector<8xf32>
    %514 = vector.multi_reduction <add>, %513, %cst_154 [1] : vector<8x128xf32> to vector<8xf32>
    %515 = vector.shape_cast %514 : vector<8xf32> to vector<8x1xf32>
    %cst_155 = arith.constant 3.125000e-02 : f32
    %516 = vector.broadcast %cst_155 : f32 to vector<8x1xf32>
    %517 = arith.mulf %515, %516 : vector<8x1xf32>
    %518 = vector.broadcast %517 : vector<8x1xf32> to vector<8x128xf32>
    %519 = arith.subf %513, %518 : vector<8x128xf32>
    %520 = arith.mulf %519, %18 : vector<8x128xf32>
    %521 = arith.mulf %520, %520 : vector<8x128xf32>
    %cst_156 = arith.constant dense<0.000000e+00> : vector<8xf32>
    %522 = vector.multi_reduction <add>, %521, %cst_156 [1] : vector<8x128xf32> to vector<8xf32>
    %523 = vector.shape_cast %522 : vector<8xf32> to vector<8x1xf32>
    %cst_157 = arith.constant 3.125000e-02 : f32
    %524 = vector.broadcast %cst_157 : f32 to vector<8x1xf32>
    %525 = arith.mulf %523, %524 : vector<8x1xf32>
    %cst_158 = arith.constant 9.99999974E-6 : f32
    %526 = vector.broadcast %cst_158 : f32 to vector<8x1xf32>
    %527 = arith.addf %525, %526 : vector<8x1xf32>
    %528 = math.rsqrt %527 : vector<8x1xf32>
    %529 = vector.broadcast %528 : vector<8x1xf32> to vector<8x128xf32>
    %530 = arith.mulf %519, %529 : vector<8x128xf32>
    %531 = arith.mulf %530, %9 : vector<8x128xf32>
    %532 = arith.addf %531, %12 : vector<8x128xf32>
    %533 = arith.index_cast %c7_i32 : i32 to index
    %c0_159 = arith.constant 0 : index
    %c0_160 = arith.constant 0 : index
    %534 = vector.load %arg3[%533, %c0_159, %c0_160] : memref<8x8x128xf32, #tpu.memory_space<vmem>>, vector<1x8x128xf32>
    %535 = vector.shape_cast %534 : vector<1x8x128xf32> to vector<8x128xf32>
    %536 = arith.mulf %512, %532 : vector<8x128xf32>
    %537 = arith.addf %535, %536 : vector<8x128xf32>
    %538 = math.tanh %537 : vector<8x128xf32>
    %cst_161 = arith.constant 1.000000e+00 : f32
    %539 = vector.broadcast %cst_161 : f32 to vector<8x128xf32>
    %540 = arith.subf %539, %511 : vector<8x128xf32>
    %541 = arith.mulf %540, %477 : vector<8x128xf32>
    %542 = arith.mulf %511, %538 : vector<8x128xf32>
    %543 = arith.addf %541, %542 : vector<8x128xf32>
    %544 = arith.index_cast %c7_i32 : i32 to index
    %c0_162 = arith.constant 0 : index
    %c0_163 = arith.constant 0 : index
    %545 = vector.load %arg7[%544, %c0_162, %c0_163] : memref<8x8x128xf32, #tpu.memory_space<vmem>>, vector<1x8x128xf32>
    %546 = vector.shape_cast %545 : vector<1x8x128xf32> to vector<8x128xf32>
    %547 = vector.shape_cast %543 : vector<8x128xf32> to vector<1x8x128xf32>
    tpu.vector_store %arg7[%544, %c0_162, %c0_163], %547 {strides = array<i32>} : memref<8x8x128xf32, #tpu.memory_space<vmem>>, vector<1x8x128xf32>,
    %c8_i32 = arith.constant 8 : i32
    %c0_164 = arith.constant 0 : index
    %c0_165 = arith.constant 0 : index
    %548 = vector.load %arg8[%c0_164, %c0_165] : memref<8x128xf32, #tpu.memory_space<vmem>>, vector<8x128xf32>
    tpu.vector_store %arg8[%c0_164, %c0_165], %543 {strides = array<i32>} : memref<8x128xf32, #tpu.memory_space<vmem>>, vector<8x128xf32>,
    return
  }
  func.func @transform_0(%arg0: i32, %arg1: i32) -> (i32, i32, i32) {
    %c0_i32 = arith.constant 0 : i32
    %c0_i32_0 = arith.constant 0 : i32
    return %arg1, %arg0, %c0_i32 : i32, i32, i32
  }
  func.func @transform_1(%arg0: i32, %arg1: i32) -> (i32, i32, i32) {
    %c0_i32 = arith.constant 0 : i32
    %c0_i32_0 = arith.constant 0 : i32
    return %arg1, %arg0, %c0_i32 : i32, i32, i32
  }
  func.func @transform_2(%arg0: i32, %arg1: i32) -> (i32, i32) {
    %c0_i32 = arith.constant 0 : i32
    %c0_i32_0 = arith.constant 0 : i32
    %c0_i32_1 = arith.constant 0 : i32
    return %c0_i32, %c0_i32_0 : i32, i32
  }
  func.func @transform_3(%arg0: i32, %arg1: i32) -> (i32, i32) {
    %c0_i32 = arith.constant 0 : i32
    %c0_i32_0 = arith.constant 0 : i32
    %c0_i32_1 = arith.constant 0 : i32
    return %c0_i32, %c0_i32_0 : i32, i32
  }
  func.func @transform_4(%arg0: i32, %arg1: i32) -> (i32, i32) {
    %c0_i32 = arith.constant 0 : i32
    %c0_i32_0 = arith.constant 0 : i32
    %c0_i32_1 = arith.constant 0 : i32
    return %c0_i32, %c0_i32_0 : i32, i32
  }
  func.func @transform_5(%arg0: i32, %arg1: i32) -> (i32, i32, i32) {
    %c0_i32 = arith.constant 0 : i32
    %c0_i32_0 = arith.constant 0 : i32
    return %arg1, %arg0, %c0_i32 : i32, i32, i32
  }
}

</mosaic_0001>

<llo_original>
// kernel: gru_forward_pallas.1
$region0: #{gru_forward_pallas.1}
  #allocation0 [shape = 'u32[]', space=smem, size = 0x4, offset = 0x4, fixed_abs, tag = 'smem constant byte address 0x4 - core index']
  #allocation1 [shape = 'u32[72,128]{1,0:T(1,128)}', space=vmem, size = 0x9000, scoped, tag = 'internal scratch']
  #allocation2 [shape = 'f32[8,128]{1,0:T(8,128)}', space=vmem, size = 0x1000, scoped, tag = 'scratch operand']
  %s0 = inlined_call_operand.vmem [shape: f32[8,8,256], index: 0, kind: input, shape index: {}]
  %s1 = inlined_call_operand.vmem [shape: f32[8,8,128], index: 1, kind: input, shape index: {}]
  %s2 = inlined_call_operand.vmem [shape: f32[128,384], index: 2, kind: input, shape index: {}]
  %s3 = inlined_call_operand.vmem [shape: f32[2,256], index: 3, kind: input, shape index: {}]
  %s4 = inlined_call_operand.vmem [shape: f32[3,128], index: 4, kind: input, shape index: {}]
  %s5 = inlined_call_operand.vmem [shape: f32[8,8,128], index: 5, kind: output, shape index: {}]
  %s6 = sld [smem:[#allocation0]]
  $region34: #{gru_forward_pallas.1} parent=0
    _
  %s8 = ssub.s32 1, %s6
  %s9 = scalar_select 0, %s8, %s6
  // Predicated region
  $region2: #{gru_forward_pallas.1} parent=0 // pred_check
    _
  $region3: #{gru_forward_pallas.1} parent=0 // pred_check_branch
    %11 = sbr.rel (0) target = $region5
  $region4: #{gru_forward_pallas.1} parent=0 // pred_region
    _
  $region5: #{gru_forward_pallas.1} parent=0 // pred_fallthru
    _
  // Predicated region
  $region6: #{gru_forward_pallas.1} parent=0 // pred_check
    _
  $region7: #{gru_forward_pallas.1} parent=0 // pred_check_branch
    %13 = sbr.rel (0) target = $region9
  $region8: #{gru_forward_pallas.1} parent=0 // pred_region
    _
  $region9: #{gru_forward_pallas.1} parent=0 // pred_fallthru
    _
  // Predicated region
  $region10: #{gru_forward_pallas.1} parent=0 // pred_check
    _
  $region11: #{gru_forward_pallas.1} parent=0 // pred_check_branch
    %15 = sbr.rel (0) target = $region13
  $region12: #{gru_forward_pallas.1} parent=0 // pred_region
    _
  $region13: #{gru_forward_pallas.1} parent=0 // pred_fallthru
    _
  // Predicated region
  $region14: #{gru_forward_pallas.1} parent=0 // pred_check
    _
  $region15: #{gru_forward_pallas.1} parent=0 // pred_check_branch
    %17 = sbr.rel (0) target = $region17
  $region16: #{gru_forward_pallas.1} parent=0 // pred_region
    _
  $region17: #{gru_forward_pallas.1} parent=0 // pred_fallthru
    _
  // Predicated region
  $region18: #{gru_forward_pallas.1} parent=0 // pred_check
    _
  $region19: #{gru_forward_pallas.1} parent=0 // pred_check_branch
    %19 = sbr.rel (0) target = $region21
  $region20: #{gru_forward_pallas.1} parent=0 // pred_region
    _
  $region21: #{gru_forward_pallas.1} parent=0 // pred_fallthru
    _
  %p20 = scmp.eq.s32.totalorder 0, 0
  // Predicated region
  $region22: #{gru_forward_pallas.1} parent=0 // pred_check
    %p21 = pneg %p20
  $region23: #{gru_forward_pallas.1} parent=0 // pred_check_branch
    %23 = sbr.rel (%p21) target = $region25
  $region24: #{gru_forward_pallas.1} parent=0 // pred_region
    %24 = vst [vmem:[#allocation2] sm:$0xff] 0.0
  $region25: #{gru_forward_pallas.1} parent=0 // pred_fallthru
    _
  %v25 = vld [vmem:[%s2] sm:$0xff]
  %v26 = vld [vmem:[%s2 + $0x8] sm:$0xff]
  %v27 = vld [vmem:[%s2 + $0x10] sm:$0xff]
  %v28 = vld [vmem:[%s2 + $0x18] sm:$0xff]
  %v29 = vld [vmem:[%s2 + $0x20] sm:$0xff]
  %v30 = vld [vmem:[%s2 + $0x28] sm:$0xff]
  %v31 = vld [vmem:[%s2 + $0x30] sm:$0xff]
  %v32 = vld [vmem:[%s2 + $0x38] sm:$0xff]
  %v33 = vld [vmem:[%s2 + $0x40] sm:$0xff]
  %v34 = vld [vmem:[%s2 + $0x48] sm:$0xff]
  %v35 = vld [vmem:[%s2 + $0x50] sm:$0xff]
  %v36 = vld [vmem:[%s2 + $0x58] sm:$0xff]
  %v37 = vld [vmem:[%s2 + $0x60] sm:$0xff]
  %v38 = vld [vmem:[%s2 + $0x68] sm:$0xff]
  %v39 = vld [vmem:[%s2 + $0x70] sm:$0xff]
  %v40 = vld [vmem:[%s2 + $0x78] sm:$0xff]
  %v41 = vld [vmem:[%s2 + $0x80] sm:$0xff]
  %v42 = vld [vmem:[%s2 + $0x88] sm:$0xff]
  %v43 = vld [vmem:[%s2 + $0x90] sm:$0xff]
  %v44 = vld [vmem:[%s2 + $0x98] sm:$0xff]
  %v45 = vld [vmem:[%s2 + $0xa0] sm:$0xff]
  %v46 = vld [vmem:[%s2 + $0xa8] sm:$0xff]
  %v47 = vld [vmem:[%s2 + $0xb0] sm:$0xff]
  %v48 = vld [vmem:[%s2 + $0xb8] sm:$0xff]
  %v49 = vld [vmem:[%s2 + $0xc0] sm:$0xff]
  %v50 = vld [vmem:[%s2 + $0xc8] sm:$0xff]
  %v51 = vld [vmem:[%s2 + $0xd0] sm:$0xff]
  %v52 = vld [vmem:[%s2 + $0xd8] sm:$0xff]
  %v53 = vld [vmem:[%s2 + $0xe0] sm:$0xff]
  %v54 = vld [vmem:[%s2 + $0xe8] sm:$0xff]
  %v55 = vld [vmem:[%s2 + $0xf0] sm:$0xff]
  %v56 = vld [vmem:[%s2 + $0xf8] sm:$0xff]
  %v57 = vld [vmem:[%s2 + $0x100] sm:$0xff]
  %v58 = vld [vmem:[%s2 + $0x108] sm:$0xff]
  %v59 = vld [vmem:[%s2 + $0x110] sm:$0xff]
  %v60 = vld [vmem:[%s2 + $0x118] sm:$0xff]
  %v61 = vld [vmem:[%s2 + $0x120] sm:$0xff]
  %v62 = vld [vmem:[%s2 + $0x128] sm:$0xff]
  %v63 = vld [vmem:[%s2 + $0x130] sm:$0xff]
  %v64 = vld [vmem:[%s2 + $0x138] sm:$0xff]
  %v65 = vld [vmem:[%s2 + $0x140] sm:$0xff]
  %v66 = vld [vmem:[%s2 + $0x148] sm:$0xff]
  %v67 = vld [vmem:[%s2 + $0x150] sm:$0xff]
  %v68 = vld [vmem:[%s2 + $0x158] sm:$0xff]
  %v69 = vld [vmem:[%s2 + $0x160] sm:$0xff]
  %v70 = vld [vmem:[%s2 + $0x168] sm:$0xff]
  %v71 = vld [vmem:[%s2 + $0x170] sm:$0xff]
  %v72 = vld [vmem:[%s2 + $0x178] sm:$0xff]
  %v73 = vld [vmem:[%s3] ss:$2 sm:$0x3]
  %v75 = vperm.slane %v73, 0
  %v76 = vperm.slane %v73, 1
  %v79 = vld [vmem:[%s4] sm:$0x1]
  %v80 = vperm.slane %v79, 0
  %v81 = vld [vmem:[%s4 + $0x1] sm:$0x1]
  %v82 = vperm.slane %v81, 0
  %s83 = scalar_lea.vmem %s3, 1
  %v84 = vld [vmem:[%s83] ss:$2 sm:$0x3]
  %v86 = vperm.slane %v84, 0
  %v87 = vperm.slane %v84, 1
  %v90 = vld [vmem:[%s4 + $0x2] sm:$0x1]
  %v91 = vperm.slane %v90, 0
  %v92 = vld [vmem:[#allocation2] sm:$0xff]
  %93 = vmatpush.msra.mxu0 %v70
  %94 = vmatpush.msra.mxu0 %v67
  %95 = vmatpush.msra.mxu0 %v64
  %96 = vmatpush.msra.mxu0 %v61
  %97 = vmatpush.msra.mxu0 %v58
  %98 = vmatpush.msra.mxu0 %v55
  %99 = vmatpush.msra.mxu0 %v52
  %100 = vmatpush.msra.mxu0 %v49
  %101 = vmatpush.msra.mxu0 %v46
  %102 = vmatpush.msra.mxu0 %v43
  %103 = vmatpush.msra.mxu0 %v40
  %104 = vmatpush.msra.mxu0 %v37
  %105 = vmatpush.msra.mxu0 %v34
  %106 = vmatpush.msra.mxu0 %v31
  %107 = vmatpush.msra.mxu0 %v28
  %108 = vmatpush.msra.mxu0 %v25
  %109 = vmatmul.f32.gmra.mxu0 %v92
  %v110 = vpop.f32.mrf.mxu0
  %v111 = vadd.f32 0.0, %v110
  %112 = vdwg.mxu0
  %113 = vmatpush.msra.mxu0 %v71
  %114 = vmatpush.msra.mxu0 %v68
  %115 = vmatpush.msra.mxu0 %v65
  %116 = vmatpush.msra.mxu0 %v62
  %117 = vmatpush.msra.mxu0 %v59
  %118 = vmatpush.msra.mxu0 %v56
  %119 = vmatpush.msra.mxu0 %v53
  %120 = vmatpush.msra.mxu0 %v50
  %121 = vmatpush.msra.mxu0 %v47
  %122 = vmatpush.msra.mxu0 %v44
  %123 = vmatpush.msra.mxu0 %v41
  %124 = vmatpush.msra.mxu0 %v38
  %125 = vmatpush.msra.mxu0 %v35
  %126 = vmatpush.msra.mxu0 %v32
  %127 = vmatpush.msra.mxu0 %v29
  %128 = vmatpush.msra.mxu0 %v26
  %129 = vmatmul.f32.gmra.mxu0 %v92
  %v130 = vpop.f32.mrf.mxu0
  %v131 = vadd.f32 0.0, %v130
  %132 = vdwg.mxu0
  %133 = vmatpush.msra.mxu0 %v72
  %134 = vmatpush.msra.mxu0 %v69
  %135 = vmatpush.msra.mxu0 %v66
  %136 = vmatpush.msra.mxu0 %v63
  %137 = vmatpush.msra.mxu0 %v60
  %138 = vmatpush.msra.mxu0 %v57
  %139 = vmatpush.msra.mxu0 %v54
  %140 = vmatpush.msra.mxu0 %v51
  %141 = vmatpush.msra.mxu0 %v48
  %142 = vmatpush.msra.mxu0 %v45
  %143 = vmatpush.msra.mxu0 %v42
  %144 = vmatpush.msra.mxu0 %v39
  %145 = vmatpush.msra.mxu0 %v36
  %146 = vmatpush.msra.mxu0 %v33
  %147 = vmatpush.msra.mxu0 %v30
  %148 = vmatpush.msra.mxu0 %v27
  %149 = vmatmul.f32.gmra.mxu0 %v92
  %v150 = vpop.f32.mrf.mxu0
  %v151 = vadd.f32 0.0, %v150
  %152 = vdwg.mxu0
  %v153 = vadd.f32 %v111, %v131
  %154 = vadd.xlane.f32.xlu0 %v153
  %v155 = vpop.xlane.xlu0 %154
  %v156 = vmul.f32 %v155, 0.015625
  %v157 = vsub.f32 %v111, %v156
  %v158 = vsub.f32 %v131, %v156
  %v159 = vmul.f32 %v157, %v86
  %v160 = vmul.f32 %v158, %v87
  %v161 = vmul.f32 %v159, %v159
  %v162 = vmul.f32 %v160, %v160
  %v163 = vadd.f32 %v161, %v162
  %164 = vadd.xlane.f32.xlu0 %v163
  %v165 = vpop.xlane.xlu0 %164
  %v166 = vmul.f32 %v165, 0.015625
  %v167 = vadd.f32 %v166, 1e-05
  %v168 = vrsqrt.pop %v167
  %v169 = vmul.f32 %v168, %v167
  %v170 = vmul.f32 %v169, %v168
  %v171 = vmul.f32 0.5, %v170
  %v172 = vsub.f32 1.5, %v171
  %v173 = vmul.f32 %v168, %v172
  %vm174 = vweird.f32 %v167
  %vm175 = vweird.f32 %v168
  %vm176 = vmor %vm174, %vm175
  %v177 = vsel %vm176, %v168, %v173
  %v178 = vmul.f32 %v157, %v177
  %v179 = vmul.f32 %v158, %v177
  %v180 = vmul.f32 %v178, %v75
  %v181 = vmul.f32 %v179, %v76
  %v182 = vld [vmem:[%s0] sm:$0xff]
  %v183 = vld [vmem:[%s0 + $0x8] sm:$0xff]
  %v184 = vadd.f32 %v180, %v182
  %v185 = vadd.f32 %v181, %v183
  %v186 = vxor.u32 %v184, 2147483648
  %v187 = vxor.u32 %v185, 2147483648
  %v188 = vmul.f32 %v186, 1.442695
  %v189 = vpow.pop %v188
  %v190 = vmul.f32 %v187, 1.442695
  %v191 = vpow.pop %v190
  %v192 = vadd.f32 %v189, 1.0
  %v193 = vadd.f32 %v191, 1.0
  %v194 = vrcp.pop %v192
  %v195 = vmul.f32 %v192, %v194
  %v196 = vsub.f32 1.0, %v195
  %v197 = vmul.f32 %v194, %v196
  %v198 = vadd.f32 %v194, %v197
  %vm199 = vweird.f32 %v192
  %vm200 = vweird.f32 %v194
  %vm201 = vmor %vm199, %vm200
  %v202 = vsel %vm201, %v194, %v198
  %v203 = vand.u32 2147483647, %v192
  %vm204 = vcmp.eq.f32.partialorder %v203, 8.507059e+37
  %v205 = vand.u32 %v192, 2147483648
  %v206 = vor.u32 1.1754944e-38, %v205
  %v207 = vsel %vm204, %v206, %v202
  %v208 = vmul.f32 1.0, %v207
  %v209 = vrcp.pop %v193
  %v210 = vmul.f32 %v193, %v209
  %v211 = vsub.f32 1.0, %v210
  %v212 = vmul.f32 %v209, %v211
  %v213 = vadd.f32 %v209, %v212
  %vm214 = vweird.f32 %v193
  %vm215 = vweird.f32 %v209
  %vm216 = vmor %vm214, %vm215
  %v217 = vsel %vm216, %v209, %v213
  %v218 = vand.u32 2147483647, %v193
  %vm219 = vcmp.eq.f32.partialorder %v218, 8.507059e+37
  %v220 = vand.u32 %v193, 2147483648
  %v221 = vor.u32 1.1754944e-38, %v220
  %v222 = vsel %vm219, %v221, %v217
  %v223 = vmul.f32 1.0, %v222
  %224 = vadd.xlane.f32.xlu0 %v151
  %v225 = vpop.xlane.xlu0 %224
  %v226 = vmul.f32 %v225, 0.03125
  %v227 = vsub.f32 %v151, %v226
  %v228 = vmul.f32 %v227, %v91
  %v229 = vmul.f32 %v228, %v228
  %230 = vadd.xlane.f32.xlu0 %v229
  %v231 = vpop.xlane.xlu0 %230
  %v232 = vmul.f32 %v231, 0.03125
  %v233 = vadd.f32 %v232, 1e-05
  %v234 = vrsqrt.pop %v233
  %v235 = vmul.f32 %v234, %v233
  %v236 = vmul.f32 %v235, %v234
  %v237 = vmul.f32 0.5, %v236
  %v238 = vsub.f32 1.5, %v237
  %v239 = vmul.f32 %v234, %v238
  %vm240 = vweird.f32 %v233
  %vm241 = vweird.f32 %v234
  %vm242 = vmor %vm240, %vm241
  %v243 = vsel %vm242, %v234, %v239
  %v244 = vmul.f32 %v227, %v243
  %v245 = vmul.f32 %v244, %v80
  %v246 = vadd.f32 %v245, %v82
  %v247 = vld [vmem:[%s1] sm:$0xff]
  %v248 = vmul.f32 %v223, %v246
  %v249 = vadd.f32 %v247, %v248
  %v250 = vtanh.pop %v249
  %v251 = vsub.f32 1.0, %v208
  %v252 = vmul.f32 %v251, %v92
  %v253 = vmul.f32 %v208, %v250
  %v254 = vadd.f32 %v252, %v253
  %255 = vst [vmem:[%s5] sm:$0xff] %v254
  %256 = vmatpush.msra.mxu0 %v70
  %257 = vmatpush.msra.mxu0 %v67
  %258 = vmatpush.msra.mxu0 %v64
  %259 = vmatpush.msra.mxu0 %v61
  %260 = vmatpush.msra.mxu0 %v58
  %261 = vmatpush.msra.mxu0 %v55
  %262 = vmatpush.msra.mxu0 %v52
  %263 = vmatpush.msra.mxu0 %v49
  %264 = vmatpush.msra.mxu0 %v46
  %265 = vmatpush.msra.mxu0 %v43
  %266 = vmatpush.msra.mxu0 %v40
  %267 = vmatpush.msra.mxu0 %v37
  %268 = vmatpush.msra.mxu0 %v34
  %269 = vmatpush.msra.mxu0 %v31
  %270 = vmatpush.msra.mxu0 %v28
  %271 = vmatpush.msra.mxu0 %v25
  %272 = vmatmul.f32.gmra.mxu0 %v254
  %v273 = vpop.f32.mrf.mxu0
  %v274 = vadd.f32 0.0, %v273
  %275 = vdwg.mxu0
  %276 = vmatpush.msra.mxu0 %v71
  %277 = vmatpush.msra.mxu0 %v68
  %278 = vmatpush.msra.mxu0 %v65
  %279 = vmatpush.msra.mxu0 %v62
  %280 = vmatpush.msra.mxu0 %v59
  %281 = vmatpush.msra.mxu0 %v56
  %282 = vmatpush.msra.mxu0 %v53
  %283 = vmatpush.msra.mxu0 %v50
  %284 = vmatpush.msra.mxu0 %v47
  %285 = vmatpush.msra.mxu0 %v44
  %286 = vmatpush.msra.mxu0 %v41
  %287 = vmatpush.msra.mxu0 %v38
  %288 = vmatpush.msra.mxu0 %v35
  %289 = vmatpush.msra.mxu0 %v32
  %290 = vmatpush.msra.mxu0 %v29
  %291 = vmatpush.msra.mxu0 %v26
  %292 = vmatmul.f32.gmra.mxu0 %v254
  %v293 = vpop.f32.mrf.mxu0
  %v294 = vadd.f32 0.0, %v293
  %295 = vdwg.mxu0
  %296 = vmatpush.msra.mxu0 %v72
  %297 = vmatpush.msra.mxu0 %v69
  %298 = vmatpush.msra.mxu0 %v66
  %299 = vmatpush.msra.mxu0 %v63
  %300 = vmatpush.msra.mxu0 %v60
  %301 = vmatpush.msra.mxu0 %v57
  %302 = vmatpush.msra.mxu0 %v54
  %303 = vmatpush.msra.mxu0 %v51
  %304 = vmatpush.msra.mxu0 %v48
  %305 = vmatpush.msra.mxu0 %v45
  %306 = vmatpush.msra.mxu0 %v42
  %307 = vmatpush.msra.mxu0 %v39
  %308 = vmatpush.msra.mxu0 %v36
  %309 = vmatpush.msra.mxu0 %v33
  %310 = vmatpush.msra.mxu0 %v30
  %311 = vmatpush.msra.mxu0 %v27
  %312 = vmatmul.f32.gmra.mxu0 %v254
  %v313 = vpop.f32.mrf.mxu0
  %v314 = vadd.f32 0.0, %v313
  %315 = vdwg.mxu0
  %v316 = vadd.f32 %v274, %v294
  %317 = vadd.xlane.f32.xlu0 %v316
  %v318 = vpop.xlane.xlu0 %317
  %v319 = vmul.f32 %v318, 0.015625
  %v320 = vsub.f32 %v274, %v319
  %v321 = vsub.f32 %v294, %v319
  %v322 = vmul.f32 %v320, %v86
  %v323 = vmul.f32 %v321, %v87
  %v324 = vmul.f32 %v322, %v322
  %v325 = vmul.f32 %v323, %v323
  %v326 = vadd.f32 %v324, %v325
  %327 = vadd.xlane.f32.xlu0 %v326
  %v328 = vpop.xlane.xlu0 %327
  %v329 = vmul.f32 %v328, 0.015625
  %v330 = vadd.f32 %v329, 1e-05
  %v331 = vrsqrt.pop %v330
  %v332 = vmul.f32 %v331, %v330
  %v333 = vmul.f32 %v332, %v331
  %v334 = vmul.f32 0.5, %v333
  %v335 = vsub.f32 1.5, %v334
  %v336 = vmul.f32 %v331, %v335
  %vm337 = vweird.f32 %v330
  %vm338 = vweird.f32 %v331
  %vm339 = vmor %vm337, %vm338
  %v340 = vsel %vm339, %v331, %v336
  %v341 = vmul.f32 %v320, %v340
  %v342 = vmul.f32 %v321, %v340
  %v343 = vmul.f32 %v341, %v75
  %v344 = vmul.f32 %v342, %v76
  %s345 = scalar_lea.vmem %s0, 16
  %v346 = vld [vmem:[%s345] sm:$0xff]
  %v347 = vld [vmem:[%s345 + $0x8] sm:$0xff]
  %v348 = vadd.f32 %v343, %v346
  %v349 = vadd.f32 %v344, %v347
  %v350 = vxor.u32 %v348, 2147483648
  %v351 = vxor.u32 %v349, 2147483648
  %v352 = vmul.f32 %v350, 1.442695
  %v353 = vpow.pop %v352
  %v354 = vmul.f32 %v351, 1.442695
  %v355 = vpow.pop %v354
  %v356 = vadd.f32 %v353, 1.0
  %v357 = vadd.f32 %v355, 1.0
  %v358 = vrcp.pop %v356
  %v359 = vmul.f32 %v356, %v358
  %v360 = vsub.f32 1.0, %v359
  %v361 = vmul.f32 %v358, %v360
  %v362 = vadd.f32 %v358, %v361
  %vm363 = vweird.f32 %v356
  %vm364 = vweird.f32 %v358
  %vm365 = vmor %vm363, %vm364
  %v366 = vsel %vm365, %v358, %v362
  %v367 = vand.u32 2147483647, %v356
  %vm368 = vcmp.eq.f32.partialorder %v367, 8.507059e+37
  %v369 = vand.u32 %v356, 2147483648
  %v370 = vor.u32 1.1754944e-38, %v369
  %v371 = vsel %vm368, %v370, %v366
  %v372 = vmul.f32 1.0, %v371
  %v373 = vrcp.pop %v357
  %v374 = vmul.f32 %v357, %v373
  %v375 = vsub.f32 1.0, %v374
  %v376 = vmul.f32 %v373, %v375
  %v377 = vadd.f32 %v373, %v376
  %vm378 = vweird.f32 %v357
  %vm379 = vweird.f32 %v373
  %vm380 = vmor %vm378, %vm379
  %v381 = vsel %vm380, %v373, %v377
  %v382 = vand.u32 2147483647, %v357
  %vm383 = vcmp.eq.f32.partialorder %v382, 8.507059e+37
  %v384 = vand.u32 %v357, 2147483648
  %v385 = vor.u32 1.1754944e-38, %v384
  %v386 = vsel %vm383, %v385, %v381
  %v387 = vmul.f32 1.0, %v386
  %388 = vadd.xlane.f32.xlu0 %v314
  %v389 = vpop.xlane.xlu0 %388
  %v390 = vmul.f32 %v389, 0.03125
  %v391 = vsub.f32 %v314, %v390
  %v392 = vmul.f32 %v391, %v91
  %v393 = vmul.f32 %v392, %v392
  %394 = vadd.xlane.f32.xlu0 %v393
  %v395 = vpop.xlane.xlu0 %394
  %v396 = vmul.f32 %v395, 0.03125
  %v397 = vadd.f32 %v396, 1e-05
  %v398 = vrsqrt.pop %v397
  %v399 = vmul.f32 %v398, %v397
  %v400 = vmul.f32 %v399, %v398
  %v401 = vmul.f32 0.5, %v400
  %v402 = vsub.f32 1.5, %v401
  %v403 = vmul.f32 %v398, %v402
  %vm404 = vweird.f32 %v397
  %vm405 = vweird.f32 %v398
  %vm406 = vmor %vm404, %vm405
  %v407 = vsel %vm406, %v398, %v403
  %v408 = vmul.f32 %v391, %v407
  %v409 = vmul.f32 %v408, %v80
  %v410 = vadd.f32 %v409, %v82
  %s411 = scalar_lea.vmem %s1, 8
  %v412 = vld [vmem:[%s411] sm:$0xff]
  %v413 = vmul.f32 %v387, %v410
  %v414 = vadd.f32 %v412, %v413
  %v415 = vtanh.pop %v414
  %v416 = vsub.f32 1.0, %v372
  %v417 = vmul.f32 %v416, %v254
  %v418 = vmul.f32 %v372, %v415
  %v419 = vadd.f32 %v417, %v418
  %s420 = scalar_lea.vmem %s5, 8
  %421 = vst [vmem:[%s420] sm:$0xff] %v419
  %422 = vmatpush.msra.mxu0 %v70
  %423 = vmatpush.msra.mxu0 %v67
  %424 = vmatpush.msra.mxu0 %v64
  %425 = vmatpush.msra.mxu0 %v61
  %426 = vmatpush.msra.mxu0 %v58
  %427 = vmatpush.msra.mxu0 %v55
  %428 = vmatpush.msra.mxu0 %v52
  %429 = vmatpush.msra.mxu0 %v49
  %430 = vmatpush.msra.mxu0 %v46
  %431 = vmatpush.msra.mxu0 %v43
  %432 = vmatpush.msra.mxu0 %v40
  %433 = vmatpush.msra.mxu0 %v37
  %434 = vmatpush.msra.mxu0 %v34
  %435 = vmatpush.msra.mxu0 %v31
  %436 = vmatpush.msra.mxu0 %v28
  %437 = vmatpush.msra.mxu0 %v25
  %438 = vmatmul.f32.gmra.mxu0 %v419
  %v439 = vpop.f32.mrf.mxu0
  %v440 = vadd.f32 0.0, %v439
  %441 = vdwg.mxu0
  %442 = vmatpush.msra.mxu0 %v71
  %443 = vmatpush.msra.mxu0 %v68
  %444 = vmatpush.msra.mxu0 %v65
  %445 = vmatpush.msra.mxu0 %v62
  %446 = vmatpush.msra.mxu0 %v59
  %447 = vmatpush.msra.mxu0 %v56
  %448 = vmatpush.msra.mxu0 %v53
  %449 = vmatpush.msra.mxu0 %v50
  %450 = vmatpush.msra.mxu0 %v47
  %451 = vmatpush.msra.mxu0 %v44
  %452 = vmatpush.msra.mxu0 %v41
  %453 = vmatpush.msra.mxu0 %v38
  %454 = vmatpush.msra.mxu0 %v35
  %455 = vmatpush.msra.mxu0 %v32
  %456 = vmatpush.msra.mxu0 %v29
  %457 = vmatpush.msra.mxu0 %v26
  %458 = vmatmul.f32.gmra.mxu0 %v419
  %v459 = vpop.f32.mrf.mxu0
  %v460 = vadd.f32 0.0, %v459
  %461 = vdwg.mxu0
  %462 = vmatpush.msra.mxu0 %v72
  %463 = vmatpush.msra.mxu0 %v69
  %464 = vmatpush.msra.mxu0 %v66
  %465 = vmatpush.msra.mxu0 %v63
  %466 = vmatpush.msra.mxu0 %v60
  %467 = vmatpush.msra.mxu0 %v57
  %468 = vmatpush.msra.mxu0 %v54
  %469 = vmatpush.msra.mxu0 %v51
  %470 = vmatpush.msra.mxu0 %v48
  %471 = vmatpush.msra.mxu0 %v45
  %472 = vmatpush.msra.mxu0 %v42
  %473 = vmatpush.msra.mxu0 %v39
  %474 = vmatpush.msra.mxu0 %v36
  %475 = vmatpush.msra.mxu0 %v33
  %476 = vmatpush.msra.mxu0 %v30
  %477 = vmatpush.msra.mxu0 %v27
  %478 = vmatmul.f32.gmra.mxu0 %v419
  %v479 = vpop.f32.mrf.mxu0
  %v480 = vadd.f32 0.0, %v479
  %481 = vdwg.mxu0
  %v482 = vadd.f32 %v440, %v460
  %483 = vadd.xlane.f32.xlu0 %v482
  %v484 = vpop.xlane.xlu0 %483
  %v485 = vmul.f32 %v484, 0.015625
  %v486 = vsub.f32 %v440, %v485
  %v487 = vsub.f32 %v460, %v485
  %v488 = vmul.f32 %v486, %v86
  %v489 = vmul.f32 %v487, %v87
  %v490 = vmul.f32 %v488, %v488
  %v491 = vmul.f32 %v489, %v489
  %v492 = vadd.f32 %v490, %v491
  %493 = vadd.xlane.f32.xlu0 %v492
  %v494 = vpop.xlane.xlu0 %493
  %v495 = vmul.f32 %v494, 0.015625
  %v496 = vadd.f32 %v495, 1e-05
  %v497 = vrsqrt.pop %v496
  %v498 = vmul.f32 %v497, %v496
  %v499 = vmul.f32 %v498, %v497
  %v500 = vmul.f32 0.5, %v499
  %v501 = vsub.f32 1.5, %v500
  %v502 = vmul.f32 %v497, %v501
  %vm503 = vweird.f32 %v496
  %vm504 = vweird.f32 %v497
  %vm505 = vmor %vm503, %vm504
  %v506 = vsel %vm505, %v497, %v502
  %v507 = vmul.f32 %v486, %v506
  %v508 = vmul.f32 %v487, %v506
  %v509 = vmul.f32 %v507, %v75
  %v510 = vmul.f32 %v508, %v76
  %s511 = scalar_lea.vmem %s0, 32
  %v512 = vld [vmem:[%s511] sm:$0xff]
  %v513 = vld [vmem:[%s511 + $0x8] sm:$0xff]
  %v514 = vadd.f32 %v509, %v512
  %v515 = vadd.f32 %v510, %v513
  %v516 = vxor.u32 %v514, 2147483648
  %v517 = vxor.u32 %v515, 2147483648
  %v518 = vmul.f32 %v516, 1.442695
  %v519 = vpow.pop %v518
  %v520 = vmul.f32 %v517, 1.442695
  %v521 = vpow.pop %v520
  %v522 = vadd.f32 %v519, 1.0
  %v523 = vadd.f32 %v521, 1.0
  %v524 = vrcp.pop %v522
  %v525 = vmul.f32 %v522, %v524
  %v526 = vsub.f32 1.0, %v525
  %v527 = vmul.f32 %v524, %v526
  %v528 = vadd.f32 %v524, %v527
  %vm529 = vweird.f32 %v522
  %vm530 = vweird.f32 %v524
  %vm531 = vmor %vm529, %vm530
  %v532 = vsel %vm531, %v524, %v528
  %v533 = vand.u32 2147483647, %v522
  %vm534 = vcmp.eq.f32.partialorder %v533, 8.507059e+37
  %v535 = vand.u32 %v522, 2147483648
  %v536 = vor.u32 1.1754944e-38, %v535
  %v537 = vsel %vm534, %v536, %v532
  %v538 = vmul.f32 1.0, %v537
  %v539 = vrcp.pop %v523
  %v540 = vmul.f32 %v523, %v539
  %v541 = vsub.f32 1.0, %v540
  %v542 = vmul.f32 %v539, %v541
  %v543 = vadd.f32 %v539, %v542
  %vm544 = vweird.f32 %v523
  %vm545 = vweird.f32 %v539
  %vm546 = vmor %vm544, %vm545
  %v547 = vsel %vm546, %v539, %v543
  %v548 = vand.u32 2147483647, %v523
  %vm549 = vcmp.eq.f32.partialorder %v548, 8.507059e+37
  %v550 = vand.u32 %v523, 2147483648
  %v551 = vor.u32 1.1754944e-38, %v550
  %v552 = vsel %vm549, %v551, %v547
  %v553 = vmul.f32 1.0, %v552
  %554 = vadd.xlane.f32.xlu0 %v480
  %v555 = vpop.xlane.xlu0 %554
  %v556 = vmul.f32 %v555, 0.03125
  %v557 = vsub.f32 %v480, %v556
  %v558 = vmul.f32 %v557, %v91
  %v559 = vmul.f32 %v558, %v558
  %560 = vadd.xlane.f32.xlu0 %v559
  %v561 = vpop.xlane.xlu0 %560
  %v562 = vmul.f32 %v561, 0.03125
  %v563 = vadd.f32 %v562, 1e-05
  %v564 = vrsqrt.pop %v563
  %v565 = vmul.f32 %v564, %v563
  %v566 = vmul.f32 %v565, %v564
  %v567 = vmul.f32 0.5, %v566
  %v568 = vsub.f32 1.5, %v567
  %v569 = vmul.f32 %v564, %v568
  %vm570 = vweird.f32 %v563
  %vm571 = vweird.f32 %v564
  %vm572 = vmor %vm570, %vm571
  %v573 = vsel %vm572, %v564, %v569
  %v574 = vmul.f32 %v557, %v573
  %v575 = vmul.f32 %v574, %v80
  %v576 = vadd.f32 %v575, %v82
  %s577 = scalar_lea.vmem %s1, 16
  %v578 = vld [vmem:[%s577] sm:$0xff]
  %v579 = vmul.f32 %v553, %v576
  %v580 = vadd.f32 %v578, %v579
  %v581 = vtanh.pop %v580
  %v582 = vsub.f32 1.0, %v538
  %v583 = vmul.f32 %v582, %v419
  %v584 = vmul.f32 %v538, %v581
  %v585 = vadd.f32 %v583, %v584
  %s586 = scalar_lea.vmem %s5, 16
  %587 = vst [vmem:[%s586] sm:$0xff] %v585
  %588 = vmatpush.msra.mxu0 %v70
  %589 = vmatpush.msra.mxu0 %v67
  %590 = vmatpush.msra.mxu0 %v64
  %591 = vmatpush.msra.mxu0 %v61
  %592 = vmatpush.msra.mxu0 %v58
  %593 = vmatpush.msra.mxu0 %v55
  %594 = vmatpush.msra.mxu0 %v52
  %595 = vmatpush.msra.mxu0 %v49
  %596 = vmatpush.msra.mxu0 %v46
  %597 = vmatpush.msra.mxu0 %v43
  %598 = vmatpush.msra.mxu0 %v40
  %599 = vmatpush.msra.mxu0 %v37
  %600 = vmatpush.msra.mxu0 %v34
  %601 = vmatpush.msra.mxu0 %v31
  %602 = vmatpush.msra.mxu0 %v28
  %603 = vmatpush.msra.mxu0 %v25
  %604 = vmatmul.f32.gmra.mxu0 %v585
  %v605 = vpop.f32.mrf.mxu0
  %v606 = vadd.f32 0.0, %v605
  %607 = vdwg.mxu0
  %608 = vmatpush.msra.mxu0 %v71
  %609 = vmatpush.msra.mxu0 %v68
  %610 = vmatpush.msra.mxu0 %v65
  %611 = vmatpush.msra.mxu0 %v62
  %612 = vmatpush.msra.mxu0 %v59
  %613 = vmatpush.msra.mxu0 %v56
  %614 = vmatpush.msra.mxu0 %v53
  %615 = vmatpush.msra.mxu0 %v50
  %616 = vmatpush.msra.mxu0 %v47
  %617 = vmatpush.msra.mxu0 %v44
  %618 = vmatpush.msra.mxu0 %v41
  %619 = vmatpush.msra.mxu0 %v38
  %620 = vmatpush.msra.mxu0 %v35
  %621 = vmatpush.msra.mxu0 %v32
  %622 = vmatpush.msra.mxu0 %v29
  %623 = vmatpush.msra.mxu0 %v26
  %624 = vmatmul.f32.gmra.mxu0 %v585
  %v625 = vpop.f32.mrf.mxu0
  %v626 = vadd.f32 0.0, %v625
  %627 = vdwg.mxu0
  %628 = vmatpush.msra.mxu0 %v72
  %629 = vmatpush.msra.mxu0 %v69
  %630 = vmatpush.msra.mxu0 %v66
  %631 = vmatpush.msra.mxu0 %v63
  %632 = vmatpush.msra.mxu0 %v60
  %633 = vmatpush.msra.mxu0 %v57
  %634 = vmatpush.msra.mxu0 %v54
  %635 = vmatpush.msra.mxu0 %v51
  %636 = vmatpush.msra.mxu0 %v48
  %637 = vmatpush.msra.mxu0 %v45
  %638 = vmatpush.msra.mxu0 %v42
  %639 = vmatpush.msra.mxu0 %v39
  %640 = vmatpush.msra.mxu0 %v36
  %641 = vmatpush.msra.mxu0 %v33
  %642 = vmatpush.msra.mxu0 %v30
  %643 = vmatpush.msra.mxu0 %v27
  %644 = vmatmul.f32.gmra.mxu0 %v585
  %v645 = vpop.f32.mrf.mxu0
  %v646 = vadd.f32 0.0, %v645
  %647 = vdwg.mxu0
  %v648 = vadd.f32 %v606, %v626
  %649 = vadd.xlane.f32.xlu0 %v648
  %v650 = vpop.xlane.xlu0 %649
  %v651 = vmul.f32 %v650, 0.015625
  %v652 = vsub.f32 %v606, %v651
  %v653 = vsub.f32 %v626, %v651
  %v654 = vmul.f32 %v652, %v86
  %v655 = vmul.f32 %v653, %v87
  %v656 = vmul.f32 %v654, %v654
  %v657 = vmul.f32 %v655, %v655
  %v658 = vadd.f32 %v656, %v657
  %659 = vadd.xlane.f32.xlu0 %v658
  %v660 = vpop.xlane.xlu0 %659
  %v661 = vmul.f32 %v660, 0.015625
  %v662 = vadd.f32 %v661, 1e-05
  %v663 = vrsqrt.pop %v662
  %v664 = vmul.f32 %v663, %v662
  %v665 = vmul.f32 %v664, %v663
  %v666 = vmul.f32 0.5, %v665
  %v667 = vsub.f32 1.5, %v666
  %v668 = vmul.f32 %v663, %v667
  %vm669 = vweird.f32 %v662
  %vm670 = vweird.f32 %v663
  %vm671 = vmor %vm669, %vm670
  %v672 = vsel %vm671, %v663, %v668
  %v673 = vmul.f32 %v652, %v672
  %v674 = vmul.f32 %v653, %v672
  %v675 = vmul.f32 %v673, %v75
  %v676 = vmul.f32 %v674, %v76
  %s677 = scalar_lea.vmem %s0, 48
  %v678 = vld [vmem:[%s677] sm:$0xff]
  %v679 = vld [vmem:[%s677 + $0x8] sm:$0xff]
  %v680 = vadd.f32 %v675, %v678
  %v681 = vadd.f32 %v676, %v679
  %v682 = vxor.u32 %v680, 2147483648
  %v683 = vxor.u32 %v681, 2147483648
  %v684 = vmul.f32 %v682, 1.442695
  %v685 = vpow.pop %v684
  %v686 = vmul.f32 %v683, 1.442695
  %v687 = vpow.pop %v686
  %v688 = vadd.f32 %v685, 1.0
  %v689 = vadd.f32 %v687, 1.0
  %v690 = vrcp.pop %v688
  %v691 = vmul.f32 %v688, %v690
  %v692 = vsub.f32 1.0, %v691
  %v693 = vmul.f32 %v690, %v692
  %v694 = vadd.f32 %v690, %v693
  %vm695 = vweird.f32 %v688
  %vm696 = vweird.f32 %v690
  %vm697 = vmor %vm695, %vm696
  %v698 = vsel %vm697, %v690, %v694
  %v699 = vand.u32 2147483647, %v688
  %vm700 = vcmp.eq.f32.partialorder %v699, 8.507059e+37
  %v701 = vand.u32 %v688, 2147483648
  %v702 = vor.u32 1.1754944e-38, %v701
  %v703 = vsel %vm700, %v702, %v698
  %v704 = vmul.f32 1.0, %v703
  %v705 = vrcp.pop %v689
  %v706 = vmul.f32 %v689, %v705
  %v707 = vsub.f32 1.0, %v706
  %v708 = vmul.f32 %v705, %v707
  %v709 = vadd.f32 %v705, %v708
  %vm710 = vweird.f32 %v689
  %vm711 = vweird.f32 %v705
  %vm712 = vmor %vm710, %vm711
  %v713 = vsel %vm712, %v705, %v709
  %v714 = vand.u32 2147483647, %v689
  %vm715 = vcmp.eq.f32.partialorder %v714, 8.507059e+37
  %v716 = vand.u32 %v689, 2147483648
  %v717 = vor.u32 1.1754944e-38, %v716
  %v718 = vsel %vm715, %v717, %v713
  %v719 = vmul.f32 1.0, %v718
  %720 = vadd.xlane.f32.xlu0 %v646
  %v721 = vpop.xlane.xlu0 %720
  %v722 = vmul.f32 %v721, 0.03125
  %v723 = vsub.f32 %v646, %v722
  %v724 = vmul.f32 %v723, %v91
  %v725 = vmul.f32 %v724, %v724
  %726 = vadd.xlane.f32.xlu0 %v725
  %v727 = vpop.xlane.xlu0 %726
  %v728 = vmul.f32 %v727, 0.03125
  %v729 = vadd.f32 %v728, 1e-05
  %v730 = vrsqrt.pop %v729
  %v731 = vmul.f32 %v730, %v729
  %v732 = vmul.f32 %v731, %v730
  %v733 = vmul.f32 0.5, %v732
  %v734 = vsub.f32 1.5, %v733
  %v735 = vmul.f32 %v730, %v734
  %vm736 = vweird.f32 %v729
  %vm737 = vweird.f32 %v730
  %vm738 = vmor %vm736, %vm737
  %v739 = vsel %vm738, %v730, %v735
  %v740 = vmul.f32 %v723, %v739
  %v741 = vmul.f32 %v740, %v80
  %v742 = vadd.f32 %v741, %v82
  %s743 = scalar_lea.vmem %s1, 24
  %v744 = vld [vmem:[%s743] sm:$0xff]
  %v745 = vmul.f32 %v719, %v742
  %v746 = vadd.f32 %v744, %v745
  %v747 = vtanh.pop %v746
  %v748 = vsub.f32 1.0, %v704
  %v749 = vmul.f32 %v748, %v585
  %v750 = vmul.f32 %v704, %v747
  %v751 = vadd.f32 %v749, %v750
  %s752 = scalar_lea.vmem %s5, 24
  %753 = vst [vmem:[%s752] sm:$0xff] %v751
  %754 = vmatpush.msra.mxu0 %v70
  %755 = vmatpush.msra.mxu0 %v67
  %756 = vmatpush.msra.mxu0 %v64
  %757 = vmatpush.msra.mxu0 %v61
  %758 = vmatpush.msra.mxu0 %v58
  %759 = vmatpush.msra.mxu0 %v55
  %760 = vmatpush.msra.mxu0 %v52
  %761 = vmatpush.msra.mxu0 %v49
  %762 = vmatpush.msra.mxu0 %v46
  %763 = vmatpush.msra.mxu0 %v43
  %764 = vmatpush.msra.mxu0 %v40
  %765 = vmatpush.msra.mxu0 %v37
  %766 = vmatpush.msra.mxu0 %v34
  %767 = vmatpush.msra.mxu0 %v31
  %768 = vmatpush.msra.mxu0 %v28
  %769 = vmatpush.msra.mxu0 %v25
  %770 = vmatmul.f32.gmra.mxu0 %v751
  %v771 = vpop.f32.mrf.mxu0
  %v772 = vadd.f32 0.0, %v771
  %773 = vdwg.mxu0
  %774 = vmatpush.msra.mxu0 %v71
  %775 = vmatpush.msra.mxu0 %v68
  %776 = vmatpush.msra.mxu0 %v65
  %777 = vmatpush.msra.mxu0 %v62
  %778 = vmatpush.msra.mxu0 %v59
  %779 = vmatpush.msra.mxu0 %v56
  %780 = vmatpush.msra.mxu0 %v53
  %781 = vmatpush.msra.mxu0 %v50
  %782 = vmatpush.msra.mxu0 %v47
  %783 = vmatpush.msra.mxu0 %v44
  %784 = vmatpush.msra.mxu0 %v41
  %785 = vmatpush.msra.mxu0 %v38
  %786 = vmatpush.msra.mxu0 %v35
  %787 = vmatpush.msra.mxu0 %v32
  %788 = vmatpush.msra.mxu0 %v29
  %789 = vmatpush.msra.mxu0 %v26
  %790 = vmatmul.f32.gmra.mxu0 %v751
  %v791 = vpop.f32.mrf.mxu0
  %v792 = vadd.f32 0.0, %v791
  %793 = vdwg.mxu0
  %794 = vmatpush.msra.mxu0 %v72
  %795 = vmatpush.msra.mxu0 %v69
  %796 = vmatpush.msra.mxu0 %v66
  %797 = vmatpush.msra.mxu0 %v63
  %798 = vmatpush.msra.mxu0 %v60
  %799 = vmatpush.msra.mxu0 %v57
  %800 = vmatpush.msra.mxu0 %v54
  %801 = vmatpush.msra.mxu0 %v51
  %802 = vmatpush.msra.mxu0 %v48
  %803 = vmatpush.msra.mxu0 %v45
  %804 = vmatpush.msra.mxu0 %v42
  %805 = vmatpush.msra.mxu0 %v39
  %806 = vmatpush.msra.mxu0 %v36
  %807 = vmatpush.msra.mxu0 %v33
  %808 = vmatpush.msra.mxu0 %v30
  %809 = vmatpush.msra.mxu0 %v27
  %810 = vmatmul.f32.gmra.mxu0 %v751
  %v811 = vpop.f32.mrf.mxu0
  %v812 = vadd.f32 0.0, %v811
  %813 = vdwg.mxu0
  %v814 = vadd.f32 %v772, %v792
  %815 = vadd.xlane.f32.xlu0 %v814
  %v816 = vpop.xlane.xlu0 %815
  %v817 = vmul.f32 %v816, 0.015625
  %v818 = vsub.f32 %v772, %v817
  %v819 = vsub.f32 %v792, %v817
  %v820 = vmul.f32 %v818, %v86
  %v821 = vmul.f32 %v819, %v87
  %v822 = vmul.f32 %v820, %v820
  %v823 = vmul.f32 %v821, %v821
  %v824 = vadd.f32 %v822, %v823
  %825 = vadd.xlane.f32.xlu0 %v824
  %v826 = vpop.xlane.xlu0 %825
  %v827 = vmul.f32 %v826, 0.015625
  %v828 = vadd.f32 %v827, 1e-05
  %v829 = vrsqrt.pop %v828
  %v830 = vmul.f32 %v829, %v828
  %v831 = vmul.f32 %v830, %v829
  %v832 = vmul.f32 0.5, %v831
  %v833 = vsub.f32 1.5, %v832
  %v834 = vmul.f32 %v829, %v833
  %vm835 = vweird.f32 %v828
  %vm836 = vweird.f32 %v829
  %vm837 = vmor %vm835, %vm836
  %v838 = vsel %vm837, %v829, %v834
  %v839 = vmul.f32 %v818, %v838
  %v840 = vmul.f32 %v819, %v838
  %v841 = vmul.f32 %v839, %v75
  %v842 = vmul.f32 %v840, %v76
  %s843 = scalar_lea.vmem %s0, 64
  %v844 = vld [vmem:[%s843] sm:$0xff]
  %v845 = vld [vmem:[%s843 + $0x8] sm:$0xff]
  %v846 = vadd.f32 %v841, %v844
  %v847 = vadd.f32 %v842, %v845
  %v848 = vxor.u32 %v846, 2147483648
  %v849 = vxor.u32 %v847, 2147483648
  %v850 = vmul.f32 %v848, 1.442695
  %v851 = vpow.pop %v850
  %v852 = vmul.f32 %v849, 1.442695
  %v853 = vpow.pop %v852
  %v854 = vadd.f32 %v851, 1.0
  %v855 = vadd.f32 %v853, 1.0
  %v856 = vrcp.pop %v854
  %v857 = vmul.f32 %v854, %v856
  %v858 = vsub.f32 1.0, %v857
  %v859 = vmul.f32 %v856, %v858
  %v860 = vadd.f32 %v856, %v859
  %vm861 = vweird.f32 %v854
  %vm862 = vweird.f32 %v856
  %vm863 = vmor %vm861, %vm862
  %v864 = vsel %vm863, %v856, %v860
  %v865 = vand.u32 2147483647, %v854
  %vm866 = vcmp.eq.f32.partialorder %v865, 8.507059e+37
  %v867 = vand.u32 %v854, 2147483648
  %v868 = vor.u32 1.1754944e-38, %v867
  %v869 = vsel %vm866, %v868, %v864
  %v870 = vmul.f32 1.0, %v869
  %v871 = vrcp.pop %v855
  %v872 = vmul.f32 %v855, %v871
  %v873 = vsub.f32 1.0, %v872
  %v874 = vmul.f32 %v871, %v873
  %v875 = vadd.f32 %v871, %v874
  %vm876 = vweird.f32 %v855
  %vm877 = vweird.f32 %v871
  %vm878 = vmor %vm876, %vm877
  %v879 = vsel %vm878, %v871, %v875
  %v880 = vand.u32 2147483647, %v855
  %vm881 = vcmp.eq.f32.partialorder %v880, 8.507059e+37
  %v882 = vand.u32 %v855, 2147483648
  %v883 = vor.u32 1.1754944e-38, %v882
  %v884 = vsel %vm881, %v883, %v879
  %v885 = vmul.f32 1.0, %v884
  %886 = vadd.xlane.f32.xlu0 %v812
  %v887 = vpop.xlane.xlu0 %886
  %v888 = vmul.f32 %v887, 0.03125
  %v889 = vsub.f32 %v812, %v888
  %v890 = vmul.f32 %v889, %v91
  %v891 = vmul.f32 %v890, %v890
  %892 = vadd.xlane.f32.xlu0 %v891
  %v893 = vpop.xlane.xlu0 %892
  %v894 = vmul.f32 %v893, 0.03125
  %v895 = vadd.f32 %v894, 1e-05
  %v896 = vrsqrt.pop %v895
  %v897 = vmul.f32 %v896, %v895
  %v898 = vmul.f32 %v897, %v896
  %v899 = vmul.f32 0.5, %v898
  %v900 = vsub.f32 1.5, %v899
  %v901 = vmul.f32 %v896, %v900
  %vm902 = vweird.f32 %v895
  %vm903 = vweird.f32 %v896
  %vm904 = vmor %vm902, %vm903
  %v905 = vsel %vm904, %v896, %v901
  %v906 = vmul.f32 %v889, %v905
  %v907 = vmul.f32 %v906, %v80
  %v908 = vadd.f32 %v907, %v82
  %s909 = scalar_lea.vmem %s1, 32
  %v910 = vld [vmem:[%s909] sm:$0xff]
  %v911 = vmul.f32 %v885, %v908
  %v912 = vadd.f32 %v910, %v911
  %v913 = vtanh.pop %v912
  %v914 = vsub.f32 1.0, %v870
  %v915 = vmul.f32 %v914, %v751
  %v916 = vmul.f32 %v870, %v913
  %v917 = vadd.f32 %v915, %v916
  %s918 = scalar_lea.vmem %s5, 32
  %919 = vst [vmem:[%s918] sm:$0xff] %v917
  %920 = vmatpush.msra.mxu0 %v70
  %921 = vmatpush.msra.mxu0 %v67
  %922 = vmatpush.msra.mxu0 %v64
  %923 = vmatpush.msra.mxu0 %v61
  %924 = vmatpush.msra.mxu0 %v58
  %925 = vmatpush.msra.mxu0 %v55
  %926 = vmatpush.msra.mxu0 %v52
  %927 = vmatpush.msra.mxu0 %v49
  %928 = vmatpush.msra.mxu0 %v46
  %929 = vmatpush.msra.mxu0 %v43
  %930 = vmatpush.msra.mxu0 %v40
  %931 = vmatpush.msra.mxu0 %v37
  %932 = vmatpush.msra.mxu0 %v34
  %933 = vmatpush.msra.mxu0 %v31
  %934 = vmatpush.msra.mxu0 %v28
  %935 = vmatpush.msra.mxu0 %v25
  %936 = vmatmul.f32.gmra.mxu0 %v917
  %v937 = vpop.f32.mrf.mxu0
  %v938 = vadd.f32 0.0, %v937
  %939 = vdwg.mxu0
  %940 = vmatpush.msra.mxu0 %v71
  %941 = vmatpush.msra.mxu0 %v68
  %942 = vmatpush.msra.mxu0 %v65
  %943 = vmatpush.msra.mxu0 %v62
  %944 = vmatpush.msra.mxu0 %v59
  %945 = vmatpush.msra.mxu0 %v56
  %946 = vmatpush.msra.mxu0 %v53
  %947 = vmatpush.msra.mxu0 %v50
  %948 = vmatpush.msra.mxu0 %v47
  %949 = vmatpush.msra.mxu0 %v44
  %950 = vmatpush.msra.mxu0 %v41
  %951 = vmatpush.msra.mxu0 %v38
  %952 = vmatpush.msra.mxu0 %v35
  %953 = vmatpush.msra.mxu0 %v32
  %954 = vmatpush.msra.mxu0 %v29
  %955 = vmatpush.msra.mxu0 %v26
  %956 = vmatmul.f32.gmra.mxu0 %v917
  %v957 = vpop.f32.mrf.mxu0
  %v958 = vadd.f32 0.0, %v957
  %959 = vdwg.mxu0
  %960 = vmatpush.msra.mxu0 %v72
  %961 = vmatpush.msra.mxu0 %v69
  %962 = vmatpush.msra.mxu0 %v66
  %963 = vmatpush.msra.mxu0 %v63
  %964 = vmatpush.msra.mxu0 %v60
  %965 = vmatpush.msra.mxu0 %v57
  %966 = vmatpush.msra.mxu0 %v54
  %967 = vmatpush.msra.mxu0 %v51
  %968 = vmatpush.msra.mxu0 %v48
  %969 = vmatpush.msra.mxu0 %v45
  %970 = vmatpush.msra.mxu0 %v42
  %971 = vmatpush.msra.mxu0 %v39
  %972 = vmatpush.msra.mxu0 %v36
  %973 = vmatpush.msra.mxu0 %v33
  %974 = vmatpush.msra.mxu0 %v30
  %975 = vmatpush.msra.mxu0 %v27
  %976 = vmatmul.f32.gmra.mxu0 %v917
  %v977 = vpop.f32.mrf.mxu0
  %v978 = vadd.f32 0.0, %v977
  %979 = vdwg.mxu0
  %v980 = vadd.f32 %v938, %v958
  %981 = vadd.xlane.f32.xlu0 %v980
  %v982 = vpop.xlane.xlu0 %981
  %v983 = vmul.f32 %v982, 0.015625
  %v984 = vsub.f32 %v938, %v983
  %v985 = vsub.f32 %v958, %v983
  %v986 = vmul.f32 %v984, %v86
  %v987 = vmul.f32 %v985, %v87
  %v988 = vmul.f32 %v986, %v986
  %v989 = vmul.f32 %v987, %v987
  %v990 = vadd.f32 %v988, %v989
  %991 = vadd.xlane.f32.xlu0 %v990
  %v992 = vpop.xlane.xlu0 %991
  %v993 = vmul.f32 %v992, 0.015625
  %v994 = vadd.f32 %v993, 1e-05
  %v995 = vrsqrt.pop %v994
  %v996 = vmul.f32 %v995, %v994
  %v997 = vmul.f32 %v996, %v995
  %v998 = vmul.f32 0.5, %v997
  %v999 = vsub.f32 1.5, %v998
  %v1000 = vmul.f32 %v995, %v999
  %vm1001 = vweird.f32 %v994
  %vm1002 = vweird.f32 %v995
  %vm1003 = vmor %vm1001, %vm1002
  %v1004 = vsel %vm1003, %v995, %v1000
  %v1005 = vmul.f32 %v984, %v1004
  %v1006 = vmul.f32 %v985, %v1004
  %v1007 = vmul.f32 %v1005, %v75
  %v1008 = vmul.f32 %v1006, %v76
  %s1009 = scalar_lea.vmem %s0, 80
  %v1010 = vld [vmem:[%s1009] sm:$0xff]
  %v1011 = vld [vmem:[%s1009 + $0x8] sm:$0xff]
  %v1012 = vadd.f32 %v1007, %v1010
  %v1013 = vadd.f32 %v1008, %v1011
  %v1014 = vxor.u32 %v1012, 2147483648
  %v1015 = vxor.u32 %v1013, 2147483648
  %v1016 = vmul.f32 %v1014, 1.442695
  %v1017 = vpow.pop %v1016
  %v1018 = vmul.f32 %v1015, 1.442695
  %v1019 = vpow.pop %v1018
  %v1020 = vadd.f32 %v1017, 1.0
  %v1021 = vadd.f32 %v1019, 1.0
  %v1022 = vrcp.pop %v1020
  %v1023 = vmul.f32 %v1020, %v1022
  %v1024 = vsub.f32 1.0, %v1023
  %v1025 = vmul.f32 %v1022, %v1024
  %v1026 = vadd.f32 %v1022, %v1025
  %vm1027 = vweird.f32 %v1020
  %vm1028 = vweird.f32 %v1022
  %vm1029 = vmor %vm1027, %vm1028
  %v1030 = vsel %vm1029, %v1022, %v1026
  %v1031 = vand.u32 2147483647, %v1020
  %vm1032 = vcmp.eq.f32.partialorder %v1031, 8.507059e+37
  %v1033 = vand.u32 %v1020, 2147483648
  %v1034 = vor.u32 1.1754944e-38, %v1033
  %v1035 = vsel %vm1032, %v1034, %v1030
  %v1036 = vmul.f32 1.0, %v1035
  %v1037 = vrcp.pop %v1021
  %v1038 = vmul.f32 %v1021, %v1037
  %v1039 = vsub.f32 1.0, %v1038
  %v1040 = vmul.f32 %v1037, %v1039
  %v1041 = vadd.f32 %v1037, %v1040
  %vm1042 = vweird.f32 %v1021
  %vm1043 = vweird.f32 %v1037
  %vm1044 = vmor %vm1042, %vm1043
  %v1045 = vsel %vm1044, %v1037, %v1041
  %v1046 = vand.u32 2147483647, %v1021
  %vm1047 = vcmp.eq.f32.partialorder %v1046, 8.507059e+37
  %v1048 = vand.u32 %v1021, 2147483648
  %v1049 = vor.u32 1.1754944e-38, %v1048
  %v1050 = vsel %vm1047, %v1049, %v1045
  %v1051 = vmul.f32 1.0, %v1050
  %1052 = vadd.xlane.f32.xlu0 %v978
  %v1053 = vpop.xlane.xlu0 %1052
  %v1054 = vmul.f32 %v1053, 0.03125
  %v1055 = vsub.f32 %v978, %v1054
  %v1056 = vmul.f32 %v1055, %v91
  %v1057 = vmul.f32 %v1056, %v1056
  %1058 = vadd.xlane.f32.xlu0 %v1057
  %v1059 = vpop.xlane.xlu0 %1058
  %v1060 = vmul.f32 %v1059, 0.03125
  %v1061 = vadd.f32 %v1060, 1e-05
  %v1062 = vrsqrt.pop %v1061
  %v1063 = vmul.f32 %v1062, %v1061
  %v1064 = vmul.f32 %v1063, %v1062
  %v1065 = vmul.f32 0.5, %v1064
  %v1066 = vsub.f32 1.5, %v1065
  %v1067 = vmul.f32 %v1062, %v1066
  %vm1068 = vweird.f32 %v1061
  %vm1069 = vweird.f32 %v1062
  %vm1070 = vmor %vm1068, %vm1069
  %v1071 = vsel %vm1070, %v1062, %v1067
  %v1072 = vmul.f32 %v1055, %v1071
  %v1073 = vmul.f32 %v1072, %v80
  %v1074 = vadd.f32 %v1073, %v82
  %s1075 = scalar_lea.vmem %s1, 40
  %v1076 = vld [vmem:[%s1075] sm:$0xff]
  %v1077 = vmul.f32 %v1051, %v1074
  %v1078 = vadd.f32 %v1076, %v1077
  %v1079 = vtanh.pop %v1078
  %v1080 = vsub.f32 1.0, %v1036
  %v1081 = vmul.f32 %v1080, %v917
  %v1082 = vmul.f32 %v1036, %v1079
  %v1083 = vadd.f32 %v1081, %v1082
  %s1084 = scalar_lea.vmem %s5, 40
  %1085 = vst [vmem:[%s1084] sm:$0xff] %v1083
  %1086 = vmatpush.msra.mxu0 %v70
  %1087 = vmatpush.msra.mxu0 %v67
  %1088 = vmatpush.msra.mxu0 %v64
  %1089 = vmatpush.msra.mxu0 %v61
  %1090 = vmatpush.msra.mxu0 %v58
  %1091 = vmatpush.msra.mxu0 %v55
  %1092 = vmatpush.msra.mxu0 %v52
  %1093 = vmatpush.msra.mxu0 %v49
  %1094 = vmatpush.msra.mxu0 %v46
  %1095 = vmatpush.msra.mxu0 %v43
  %1096 = vmatpush.msra.mxu0 %v40
  %1097 = vmatpush.msra.mxu0 %v37
  %1098 = vmatpush.msra.mxu0 %v34
  %1099 = vmatpush.msra.mxu0 %v31
  %1100 = vmatpush.msra.mxu0 %v28
  %1101 = vmatpush.msra.mxu0 %v25
  %1102 = vmatmul.f32.gmra.mxu0 %v1083
  %v1103 = vpop.f32.mrf.mxu0
  %v1104 = vadd.f32 0.0, %v1103
  %1105 = vdwg.mxu0
  %1106 = vmatpush.msra.mxu0 %v71
  %1107 = vmatpush.msra.mxu0 %v68
  %1108 = vmatpush.msra.mxu0 %v65
  %1109 = vmatpush.msra.mxu0 %v62
  %1110 = vmatpush.msra.mxu0 %v59
  %1111 = vmatpush.msra.mxu0 %v56
  %1112 = vmatpush.msra.mxu0 %v53
  %1113 = vmatpush.msra.mxu0 %v50
  %1114 = vmatpush.msra.mxu0 %v47
  %1115 = vmatpush.msra.mxu0 %v44
  %1116 = vmatpush.msra.mxu0 %v41
  %1117 = vmatpush.msra.mxu0 %v38
  %1118 = vmatpush.msra.mxu0 %v35
  %1119 = vmatpush.msra.mxu0 %v32
  %1120 = vmatpush.msra.mxu0 %v29
  %1121 = vmatpush.msra.mxu0 %v26
  %1122 = vmatmul.f32.gmra.mxu0 %v1083
  %v1123 = vpop.f32.mrf.mxu0
  %v1124 = vadd.f32 0.0, %v1123
  %1125 = vdwg.mxu0
  %1126 = vmatpush.msra.mxu0 %v72
  %1127 = vmatpush.msra.mxu0 %v69
  %1128 = vmatpush.msra.mxu0 %v66
  %1129 = vmatpush.msra.mxu0 %v63
  %1130 = vmatpush.msra.mxu0 %v60
  %1131 = vmatpush.msra.mxu0 %v57
  %1132 = vmatpush.msra.mxu0 %v54
  %1133 = vmatpush.msra.mxu0 %v51
  %1134 = vmatpush.msra.mxu0 %v48
  %1135 = vmatpush.msra.mxu0 %v45
  %1136 = vmatpush.msra.mxu0 %v42
  %1137 = vmatpush.msra.mxu0 %v39
  %1138 = vmatpush.msra.mxu0 %v36
  %1139 = vmatpush.msra.mxu0 %v33
  %1140 = vmatpush.msra.mxu0 %v30
  %1141 = vmatpush.msra.mxu0 %v27
  %1142 = vmatmul.f32.gmra.mxu0 %v1083
  %v1143 = vpop.f32.mrf.mxu0
  %v1144 = vadd.f32 0.0, %v1143
  %1145 = vdwg.mxu0
  %v1146 = vadd.f32 %v1104, %v1124
  %1147 = vadd.xlane.f32.xlu0 %v1146
  %v1148 = vpop.xlane.xlu0 %1147
  %v1149 = vmul.f32 %v1148, 0.015625
  %v1150 = vsub.f32 %v1104, %v1149
  %v1151 = vsub.f32 %v1124, %v1149
  %v1152 = vmul.f32 %v1150, %v86
  %v1153 = vmul.f32 %v1151, %v87
  %v1154 = vmul.f32 %v1152, %v1152
  %v1155 = vmul.f32 %v1153, %v1153
  %v1156 = vadd.f32 %v1154, %v1155
  %1157 = vadd.xlane.f32.xlu0 %v1156
  %v1158 = vpop.xlane.xlu0 %1157
  %v1159 = vmul.f32 %v1158, 0.015625
  %v1160 = vadd.f32 %v1159, 1e-05
  %v1161 = vrsqrt.pop %v1160
  %v1162 = vmul.f32 %v1161, %v1160
  %v1163 = vmul.f32 %v1162, %v1161
  %v1164 = vmul.f32 0.5, %v1163
  %v1165 = vsub.f32 1.5, %v1164
  %v1166 = vmul.f32 %v1161, %v1165
  %vm1167 = vweird.f32 %v1160
  %vm1168 = vweird.f32 %v1161
  %vm1169 = vmor %vm1167, %vm1168
  %v1170 = vsel %vm1169, %v1161, %v1166
  %v1171 = vmul.f32 %v1150, %v1170
  %v1172 = vmul.f32 %v1151, %v1170
  %v1173 = vmul.f32 %v1171, %v75
  %v1174 = vmul.f32 %v1172, %v76
  %s1175 = scalar_lea.vmem %s0, 96
  %v1176 = vld [vmem:[%s1175] sm:$0xff]
  %v1177 = vld [vmem:[%s1175 + $0x8] sm:$0xff]
  %v1178 = vadd.f32 %v1173, %v1176
  %v1179 = vadd.f32 %v1174, %v1177
  %v1180 = vxor.u32 %v1178, 2147483648
  %v1181 = vxor.u32 %v1179, 2147483648
  %v1182 = vmul.f32 %v1180, 1.442695
  %v1183 = vpow.pop %v1182
  %v1184 = vmul.f32 %v1181, 1.442695
  %v1185 = vpow.pop %v1184
  %v1186 = vadd.f32 %v1183, 1.0
  %v1187 = vadd.f32 %v1185, 1.0
  %v1188 = vrcp.pop %v1186
  %v1189 = vmul.f32 %v1186, %v1188
  %v1190 = vsub.f32 1.0, %v1189
  %v1191 = vmul.f32 %v1188, %v1190
  %v1192 = vadd.f32 %v1188, %v1191
  %vm1193 = vweird.f32 %v1186
  %vm1194 = vweird.f32 %v1188
  %vm1195 = vmor %vm1193, %vm1194
  %v1196 = vsel %vm1195, %v1188, %v1192
  %v1197 = vand.u32 2147483647, %v1186
  %vm1198 = vcmp.eq.f32.partialorder %v1197, 8.507059e+37
  %v1199 = vand.u32 %v1186, 2147483648
  %v1200 = vor.u32 1.1754944e-38, %v1199
  %v1201 = vsel %vm1198, %v1200, %v1196
  %v1202 = vmul.f32 1.0, %v1201
  %v1203 = vrcp.pop %v1187
  %v1204 = vmul.f32 %v1187, %v1203
  %v1205 = vsub.f32 1.0, %v1204
  %v1206 = vmul.f32 %v1203, %v1205
  %v1207 = vadd.f32 %v1203, %v1206
  %vm1208 = vweird.f32 %v1187
  %vm1209 = vweird.f32 %v1203
  %vm1210 = vmor %vm1208, %vm1209
  %v1211 = vsel %vm1210, %v1203, %v1207
  %v1212 = vand.u32 2147483647, %v1187
  %vm1213 = vcmp.eq.f32.partialorder %v1212, 8.507059e+37
  %v1214 = vand.u32 %v1187, 2147483648
  %v1215 = vor.u32 1.1754944e-38, %v1214
  %v1216 = vsel %vm1213, %v1215, %v1211
  %v1217 = vmul.f32 1.0, %v1216
  %1218 = vadd.xlane.f32.xlu0 %v1144
  %v1219 = vpop.xlane.xlu0 %1218
  %v1220 = vmul.f32 %v1219, 0.03125
  %v1221 = vsub.f32 %v1144, %v1220
  %v1222 = vmul.f32 %v1221, %v91
  %v1223 = vmul.f32 %v1222, %v1222
  %1224 = vadd.xlane.f32.xlu0 %v1223
  %v1225 = vpop.xlane.xlu0 %1224
  %v1226 = vmul.f32 %v1225, 0.03125
  %v1227 = vadd.f32 %v1226, 1e-05
  %v1228 = vrsqrt.pop %v1227
  %v1229 = vmul.f32 %v1228, %v1227
  %v1230 = vmul.f32 %v1229, %v1228
  %v1231 = vmul.f32 0.5, %v1230
  %v1232 = vsub.f32 1.5, %v1231
  %v1233 = vmul.f32 %v1228, %v1232
  %vm1234 = vweird.f32 %v1227
  %vm1235 = vweird.f32 %v1228
  %vm1236 = vmor %vm1234, %vm1235
  %v1237 = vsel %vm1236, %v1228, %v1233
  %v1238 = vmul.f32 %v1221, %v1237
  %v1239 = vmul.f32 %v1238, %v80
  %v1240 = vadd.f32 %v1239, %v82
  %s1241 = scalar_lea.vmem %s1, 48
  %v1242 = vld [vmem:[%s1241] sm:$0xff]
  %v1243 = vmul.f32 %v1217, %v1240
  %v1244 = vadd.f32 %v1242, %v1243
  %v1245 = vtanh.pop %v1244
  %v1246 = vsub.f32 1.0, %v1202
  %v1247 = vmul.f32 %v1246, %v1083
  %v1248 = vmul.f32 %v1202, %v1245
  %v1249 = vadd.f32 %v1247, %v1248
  %s1250 = scalar_lea.vmem %s5, 48
  %1251 = vst [vmem:[%s1250] sm:$0xff] %v1249
  %1252 = vmatpush.msra.mxu0 %v70
  %1253 = vmatpush.msra.mxu0 %v67
  %1254 = vmatpush.msra.mxu0 %v64
  %1255 = vmatpush.msra.mxu0 %v61
  %1256 = vmatpush.msra.mxu0 %v58
  %1257 = vmatpush.msra.mxu0 %v55
  %1258 = vmatpush.msra.mxu0 %v52
  %1259 = vmatpush.msra.mxu0 %v49
  %1260 = vmatpush.msra.mxu0 %v46
  %1261 = vmatpush.msra.mxu0 %v43
  %1262 = vmatpush.msra.mxu0 %v40
  %1263 = vmatpush.msra.mxu0 %v37
  %1264 = vmatpush.msra.mxu0 %v34
  %1265 = vmatpush.msra.mxu0 %v31
  %1266 = vmatpush.msra.mxu0 %v28
  %1267 = vmatpush.msra.mxu0 %v25
  %1268 = vmatmul.f32.gmra.mxu0 %v1249
  %v1269 = vpop.f32.mrf.mxu0
  %v1270 = vadd.f32 0.0, %v1269
  %1271 = vdwg.mxu0
  %1272 = vmatpush.msra.mxu0 %v71
  %1273 = vmatpush.msra.mxu0 %v68
  %1274 = vmatpush.msra.mxu0 %v65
  %1275 = vmatpush.msra.mxu0 %v62
  %1276 = vmatpush.msra.mxu0 %v59
  %1277 = vmatpush.msra.mxu0 %v56
  %1278 = vmatpush.msra.mxu0 %v53
  %1279 = vmatpush.msra.mxu0 %v50
  %1280 = vmatpush.msra.mxu0 %v47
  %1281 = vmatpush.msra.mxu0 %v44
  %1282 = vmatpush.msra.mxu0 %v41
  %1283 = vmatpush.msra.mxu0 %v38
  %1284 = vmatpush.msra.mxu0 %v35
  %1285 = vmatpush.msra.mxu0 %v32
  %1286 = vmatpush.msra.mxu0 %v29
  %1287 = vmatpush.msra.mxu0 %v26
  %1288 = vmatmul.f32.gmra.mxu0 %v1249
  %v1289 = vpop.f32.mrf.mxu0
  %v1290 = vadd.f32 0.0, %v1289
  %1291 = vdwg.mxu0
  %1292 = vmatpush.msra.mxu0 %v72
  %1293 = vmatpush.msra.mxu0 %v69
  %1294 = vmatpush.msra.mxu0 %v66
  %1295 = vmatpush.msra.mxu0 %v63
  %1296 = vmatpush.msra.mxu0 %v60
  %1297 = vmatpush.msra.mxu0 %v57
  %1298 = vmatpush.msra.mxu0 %v54
  %1299 = vmatpush.msra.mxu0 %v51
  %1300 = vmatpush.msra.mxu0 %v48
  %1301 = vmatpush.msra.mxu0 %v45
  %1302 = vmatpush.msra.mxu0 %v42
  %1303 = vmatpush.msra.mxu0 %v39
  %1304 = vmatpush.msra.mxu0 %v36
  %1305 = vmatpush.msra.mxu0 %v33
  %1306 = vmatpush.msra.mxu0 %v30
  %1307 = vmatpush.msra.mxu0 %v27
  %1308 = vmatmul.f32.gmra.mxu0 %v1249
  %v1309 = vpop.f32.mrf.mxu0
  %v1310 = vadd.f32 0.0, %v1309
  %1311 = vdwg.mxu0
  %v1312 = vadd.f32 %v1270, %v1290
  %1313 = vadd.xlane.f32.xlu0 %v1312
  %v1314 = vpop.xlane.xlu0 %1313
  %v1315 = vmul.f32 %v1314, 0.015625
  %v1316 = vsub.f32 %v1270, %v1315
  %v1317 = vsub.f32 %v1290, %v1315
  %v1318 = vmul.f32 %v1316, %v86
  %v1319 = vmul.f32 %v1317, %v87
  %v1320 = vmul.f32 %v1318, %v1318
  %v1321 = vmul.f32 %v1319, %v1319
  %v1322 = vadd.f32 %v1320, %v1321
  %1323 = vadd.xlane.f32.xlu0 %v1322
  %v1324 = vpop.xlane.xlu0 %1323
  %v1325 = vmul.f32 %v1324, 0.015625
  %v1326 = vadd.f32 %v1325, 1e-05
  %v1327 = vrsqrt.pop %v1326
  %v1328 = vmul.f32 %v1327, %v1326
  %v1329 = vmul.f32 %v1328, %v1327
  %v1330 = vmul.f32 0.5, %v1329
  %v1331 = vsub.f32 1.5, %v1330
  %v1332 = vmul.f32 %v1327, %v1331
  %vm1333 = vweird.f32 %v1326
  %vm1334 = vweird.f32 %v1327
  %vm1335 = vmor %vm1333, %vm1334
  %v1336 = vsel %vm1335, %v1327, %v1332
  %v1337 = vmul.f32 %v1316, %v1336
  %v1338 = vmul.f32 %v1317, %v1336
  %v1339 = vmul.f32 %v1337, %v75
  %v1340 = vmul.f32 %v1338, %v76
  %s1341 = scalar_lea.vmem %s0, 112
  %v1342 = vld [vmem:[%s1341] sm:$0xff]
  %v1343 = vld [vmem:[%s1341 + $0x8] sm:$0xff]
  %v1344 = vadd.f32 %v1339, %v1342
  %v1345 = vadd.f32 %v1340, %v1343
  %v1346 = vxor.u32 %v1344, 2147483648
  %v1347 = vxor.u32 %v1345, 2147483648
  %v1348 = vmul.f32 %v1346, 1.442695
  %v1349 = vpow.pop %v1348
  %v1350 = vmul.f32 %v1347, 1.442695
  %v1351 = vpow.pop %v1350
  %v1352 = vadd.f32 %v1349, 1.0
  %v1353 = vadd.f32 %v1351, 1.0
  %v1354 = vrcp.pop %v1352
  %v1355 = vmul.f32 %v1352, %v1354
  %v1356 = vsub.f32 1.0, %v1355
  %v1357 = vmul.f32 %v1354, %v1356
  %v1358 = vadd.f32 %v1354, %v1357
  %vm1359 = vweird.f32 %v1352
  %vm1360 = vweird.f32 %v1354
  %vm1361 = vmor %vm1359, %vm1360
  %v1362 = vsel %vm1361, %v1354, %v1358
  %v1363 = vand.u32 2147483647, %v1352
  %vm1364 = vcmp.eq.f32.partialorder %v1363, 8.507059e+37
  %v1365 = vand.u32 %v1352, 2147483648
  %v1366 = vor.u32 1.1754944e-38, %v1365
  %v1367 = vsel %vm1364, %v1366, %v1362
  %v1368 = vmul.f32 1.0, %v1367
  %v1369 = vrcp.pop %v1353
  %v1370 = vmul.f32 %v1353, %v1369
  %v1371 = vsub.f32 1.0, %v1370
  %v1372 = vmul.f32 %v1369, %v1371
  %v1373 = vadd.f32 %v1369, %v1372
  %vm1374 = vweird.f32 %v1353
  %vm1375 = vweird.f32 %v1369
  %vm1376 = vmor %vm1374, %vm1375
  %v1377 = vsel %vm1376, %v1369, %v1373
  %v1378 = vand.u32 2147483647, %v1353
  %vm1379 = vcmp.eq.f32.partialorder %v1378, 8.507059e+37
  %v1380 = vand.u32 %v1353, 2147483648
  %v1381 = vor.u32 1.1754944e-38, %v1380
  %v1382 = vsel %vm1379, %v1381, %v1377
  %v1383 = vmul.f32 1.0, %v1382
  %1384 = vadd.xlane.f32.xlu0 %v1310
  %v1385 = vpop.xlane.xlu0 %1384
  %v1386 = vmul.f32 %v1385, 0.03125
  %v1387 = vsub.f32 %v1310, %v1386
  %v1388 = vmul.f32 %v1387, %v91
  %v1389 = vmul.f32 %v1388, %v1388
  %1390 = vadd.xlane.f32.xlu0 %v1389
  %v1391 = vpop.xlane.xlu0 %1390
  %v1392 = vmul.f32 %v1391, 0.03125
  %v1393 = vadd.f32 %v1392, 1e-05
  %v1394 = vrsqrt.pop %v1393
  %v1395 = vmul.f32 %v1394, %v1393
  %v1396 = vmul.f32 %v1395, %v1394
  %v1397 = vmul.f32 0.5, %v1396
  %v1398 = vsub.f32 1.5, %v1397
  %v1399 = vmul.f32 %v1394, %v1398
  %vm1400 = vweird.f32 %v1393
  %vm1401 = vweird.f32 %v1394
  %vm1402 = vmor %vm1400, %vm1401
  %v1403 = vsel %vm1402, %v1394, %v1399
  %v1404 = vmul.f32 %v1387, %v1403
  %v1405 = vmul.f32 %v1404, %v80
  %v1406 = vadd.f32 %v1405, %v82
  %s1407 = scalar_lea.vmem %s1, 56
  %v1408 = vld [vmem:[%s1407] sm:$0xff]
  %v1409 = vmul.f32 %v1383, %v1406
  %v1410 = vadd.f32 %v1408, %v1409
  %v1411 = vtanh.pop %v1410
  %v1412 = vsub.f32 1.0, %v1368
  %v1413 = vmul.f32 %v1412, %v1249
  %v1414 = vmul.f32 %v1368, %v1411
  %v1415 = vadd.f32 %v1413, %v1414
  %s1416 = scalar_lea.vmem %s5, 56
  %1417 = vst [vmem:[%s1416] sm:$0xff] %v1415
  %1418 = vst [vmem:[#allocation2] sm:$0xff] %v1415
  // Predicated region
  $region26: #{gru_forward_pallas.1} parent=0 // pred_check
    _
  $region27: #{gru_forward_pallas.1} parent=0 // pred_check_branch
    %1420 = sbr.rel (0) target = $region29
  $region28: #{gru_forward_pallas.1} parent=0 // pred_region
    _
  $region29: #{gru_forward_pallas.1} parent=0 // pred_fallthru
    _
  // Predicated region
  $region30: #{gru_forward_pallas.1} parent=0 // pred_check
    _
  $region31: #{gru_forward_pallas.1} parent=0 // pred_check_branch
    %1422 = sbr.rel (0) target = $region33
  $region32: #{gru_forward_pallas.1} parent=0 // pred_region
    _
  $region33: #{gru_forward_pallas.1} parent=0 // pred_fallthru
    _

</llo_original>
